<compile_context>
chip_gen: v6e
topology: v6e:2x2x1
jax: 0.10.0
libtpu: 0.0.40
codegen_flags: <defaults>
</compile_context>

<pallas_src>
import functools

import numpy as np
import jax
import jax.numpy as jnp
from jax.experimental import pallas as pl
from jax.experimental.pallas import tpu as pltpu

LANE = 128                       # lane width: feature dims padded to this
GRAPH_PAD = 16                   # bf16 native sublane tile for the pool rows
_VMEM_LIMIT = 48 * 1024 * 1024   # <= v7x 64 MiB physical; fine on v5e/v6e


def _round_up(n, m):
    return ((n + m - 1) // m) * m


def _pad2(a, rows, cols):
    return jnp.pad(a, ((0, rows - a.shape[0]), (0, cols - a.shape[1])))


# ----------------------------------------------------------------------------
# Pallas kernel 1: one "GIN block"
#   h = A @ x [+ add_out]                      (sum aggregation / pooling)
#   t = relu( h @ W1' + b1' )                  (Linear with folded BN, ReLU)
#   z =       t @ W2' + b2'                    (Linear with folded BN)
#   z = relu(z)  if final_relu
# Covers conv1(+bn1+relu1), the inner convs(+bn +optional relu), and the
# virtual_mlp (A = pool matrix P, add_out = previous virtual-node features).
# The reduction axis walks a compressed per-row-tile column list (scalar
# prefetch): cols_ref (1-D, gm*kmax) and counts_ref (1-D, gm).
# ----------------------------------------------------------------------------
def _gin_block_kernel(cols_ref, counts_ref, *refs, has_add_out, final_relu):
    del cols_ref  # consumed by the index_maps only
    it = iter(refs)
    a_ref = next(it)
    x_ref = next(it)
    add_out_ref = next(it) if has_add_out else None
    w1_ref = next(it)
    b1_ref = next(it)
    w2_ref = next(it)
    b2_ref = next(it)
    o_ref = next(it)
    acc_ref = next(it)

    i = pl.program_id(0)
    k = pl.program_id(1)

    @pl.when(k == 0)
    def _():
        acc_ref[...] = jnp.zeros_like(acc_ref)

    # Padding entries of the compressed column list repeat the last valid
    # column tile; guard them off so nothing is double-counted.
    @pl.when(k < counts_ref[i])
    def _():
        acc_ref[...] += jnp.dot(a_ref[...], x_ref[...],
                                preferred_element_type=jnp.float32)

    # Epilogue: folded-BN MLP, run once per output row tile.
    @pl.when(k == pl.num_programs(1) - 1)
    def _():
        h = acc_ref[...]
        if has_add_out:
            h = h + add_out_ref[...].astype(jnp.float32)
        t = jnp.dot(h.astype(jnp.bfloat16), w1_ref[...],
                    preferred_element_type=jnp.float32) + b1_ref[...]
        t = jnp.maximum(t, 0.0)
        z = jnp.dot(t.astype(jnp.bfloat16), w2_ref[...],
                    preferred_element_type=jnp.float32) + b2_ref[...]
        if final_relu:
            z = jnp.maximum(z, 0.0)
        o_ref[...] = z.astype(o_ref.dtype)


def gin_block_pallas(a, x, add_out, w1, b1, w2, b2, *, cols, counts, kmax,
                     final_relu, row_tile=256, k_tile=256):
    M, K = a.shape
    F = x.shape[1]
    H = w1.shape[1]
    Dout = w2.shape[1]
    TM = min(row_tile, M)
    TK = min(k_tile, K)
    assert M % TM == 0 and K % TK == 0, "pad rows/cols to the tile size"
    gm = M // TM
    assert counts.shape[0] == gm and cols.shape[0] == gm * kmax

    has_add_out = add_out is not None

    # Data-dependent index maps: only occupied tiles of A / x are ever DMA'd.
    def a_map(i, k, cols_ref, counts_ref):
        return (i, cols_ref[i * kmax + k])

    def x_map(i, k, cols_ref, counts_ref):
        return (cols_ref[i * kmax + k], 0)

    in_specs = [
        pl.BlockSpec((TM, TK), a_map),                     # A_hat / P tile
        pl.BlockSpec((TK, F), x_map),                      # x tile
    ]
    args = [a, x]
    if has_add_out:
        in_specs.append(pl.BlockSpec((TM, F), lambda i, k, c, n: (i, 0)))
        args.append(add_out)
    # Grid-invariant blocks (index (0,0)): DMA'd once, never re-fetched.
    in_specs += [
        pl.BlockSpec((F, H), lambda i, k, c, n: (0, 0)),       # W1 (BN folded)
        pl.BlockSpec((1, H), lambda i, k, c, n: (0, 0)),       # b1
        pl.BlockSpec((H, Dout), lambda i, k, c, n: (0, 0)),    # W2 (BN folded)
        pl.BlockSpec((1, Dout), lambda i, k, c, n: (0, 0)),    # b2
    ]
    args += [w1, b1, w2, b2]

    kern = functools.partial(_gin_block_kernel, has_add_out=has_add_out,
                             final_relu=final_relu)

    nnz_tiles = int(np.asarray(counts).sum())
    flops = 2 * nnz_tiles * TM * TK * F + 2 * M * F * H + 2 * M * H * Dout
    bytes_accessed = (nnz_tiles * TM * TK * 2          # occupied A tiles
                      + nnz_tiles * TK * F * 2         # streamed x tiles
                      + (M * F * 2 if has_add_out else 0)
                      + (w1.size + w2.size) * 2 + (b1.size + b2.size) * 4
                      + M * Dout * 2)

    return pl.pallas_call(
        kern,
        out_shape=jax.ShapeDtypeStruct((M, Dout), jnp.bfloat16),
        grid_spec=pltpu.PrefetchScalarGridSpec(
            num_scalar_prefetch=2,
            grid=(gm, kmax),
            in_specs=in_specs,
            out_specs=pl.BlockSpec((TM, Dout), lambda i, k, c, n: (i, 0)),
            scratch_shapes=[pltpu.VMEM((TM, F), jnp.float32)],
        ),
        compiler_params=pltpu.CompilerParams(
            dimension_semantics=("parallel", "arbitrary"),
            vmem_limit_bytes=_VMEM_LIMIT),
        cost_estimate=pl.CostEstimate(flops=flops, transcendentals=0,
                                      bytes_accessed=bytes_accessed),
    )(jnp.asarray(cols, jnp.int32), jnp.asarray(counts, jnp.int32), *args)


def gin_block_ref(a, x, add_out, w1, b1, w2, b2, *, final_relu):
    """Pure-JAX reference with identical (bf16 operand, f32 accum) math."""
    h = jnp.dot(a, x, preferred_element_type=jnp.float32)
    if add_out is not None:
        h = h + add_out.astype(jnp.float32)
    t = jnp.dot(h.astype(jnp.bfloat16), w1,
                preferred_element_type=jnp.float32) + b1
    t = jnp.maximum(t, 0.0)
    z = jnp.dot(t.astype(jnp.bfloat16), w2,
                preferred_element_type=jnp.float32) + b2
    if final_relu:
        z = jnp.maximum(z, 0.0)
    return z.astype(jnp.bfloat16)


# ----------------------------------------------------------------------------
# Pallas kernel 2: readout (global add pool) + classifier Linear
#   out = (P @ x) @ Wc + bc        (accumulated over node tiles)
# Every node tile holds at least one real node (N_pad rounds up to the tile),
# so no occupancy mask is needed here.
# ----------------------------------------------------------------------------
def _readout_kernel(p_ref, x_ref, wc_ref, bc_ref, o_ref, acc_ref):
    k = pl.program_id(0)

    @pl.when(k == 0)
    def _():
        acc_ref[...] = jnp.zeros_like(acc_ref)

    acc_ref[...] += jnp.dot(p_ref[...], x_ref[...],
                            preferred_element_type=jnp.float32)

    @pl.when(k == pl.num_programs(0) - 1)
    def _():
        o_ref[...] = (jnp.dot(acc_ref[...].astype(jnp.bfloat16), wc_ref[...],
                              preferred_element_type=jnp.float32)
                      + bc_ref[...])


def readout_classifier_pallas(p, x, wc, bc, *, k_tile=256):
    B, K = p.shape
    D = x.shape[1]
    O = wc.shape[1]
    TK = min(k_tile, K)
    assert K % TK == 0
    gk = K // TK

    return pl.pallas_call(
        _readout_kernel,
        out_shape=jax.ShapeDtypeStruct((B, O), jnp.float32),
        grid_spec=pltpu.PrefetchScalarGridSpec(
            num_scalar_prefetch=0,
            grid=(gk,),
            in_specs=[
                pl.BlockSpec((B, TK), lambda k: (0, k)),
                pl.BlockSpec((TK, D), lambda k: (k, 0)),
                pl.BlockSpec((D, O), lambda k: (0, 0)),
                pl.BlockSpec((1, O), lambda k: (0, 0)),
            ],
            out_specs=pl.BlockSpec((B, O), lambda k: (0, 0)),
            scratch_shapes=[pltpu.VMEM((B, D), jnp.float32)],
        ),
        compiler_params=pltpu.CompilerParams(
            dimension_semantics=("arbitrary",),
            vmem_limit_bytes=_VMEM_LIMIT),
        cost_estimate=pl.CostEstimate(
            flops=2 * B * K * D + 2 * B * D * O, transcendentals=0,
            bytes_accessed=p.size * 2 + x.size * 2 + wc.size * 2 + B * O * 4),
    )(p, x, wc, bc)


def readout_classifier_ref(p, x, wc, bc):
    pooled = jnp.dot(p, x, preferred_element_type=jnp.float32)
    return jnp.dot(pooled.astype(jnp.bfloat16), wc,
                   preferred_element_type=jnp.float32) + bc


# ----------------------------------------------------------------------------
# Compressed tile structure: per-row-tile nonzero column tiles of a
# block-sparse aggregation matrix (host-side; data-dependent grid sizing).
# ----------------------------------------------------------------------------
def _compress_tiles(occ):
    gm, _ = occ.shape
    counts = occ.sum(axis=1).astype(np.int32)
    kmax = max(1, int(counts.max()))
    cols = np.zeros((gm, kmax), np.int32)
    for i in range(gm):
        nz = np.nonzero(occ[i])[0]
        if len(nz):
            cols[i, :len(nz)] = nz
            cols[i, len(nz):] = nz[-1]     # repeat last valid -> no re-DMA
    return cols.reshape(-1), counts, kmax


# ----------------------------------------------------------------------------
# Parameters: PyTorch-shaped f32 init, then fold eval-mode BN into the
# preceding Linear, zero-pad feature dims to 128 lanes, cast weights to bf16.
# ----------------------------------------------------------------------------
def init_raw_params(key, dim_node, dim_inner, dim_out, num_layer, bn_eps=1e-5):
    D = dim_inner
    keys = iter(jax.random.split(key, 8 * num_layer + 16))

    def lin(k, din, dout):
        kw, kb = jax.random.split(k)
        w = jax.random.normal(kw, (din, dout), jnp.float32) / jnp.sqrt(float(din))
        b = 0.01 * jax.random.normal(kb, (1, dout), jnp.float32)
        return w, b

    def bn(k, d):
        # eval-mode BN == affine: scale = gamma/sqrt(var+eps), shift = beta - mean*scale
        kg, kb = jax.random.split(k)
        gamma = 1.0 + 0.1 * jax.random.normal(kg, (1, d), jnp.float32)
        beta = 0.1 * jax.random.normal(kb, (1, d), jnp.float32)
        mean = jnp.zeros((1, d), jnp.float32)
        var = jnp.ones((1, d), jnp.float32)
        scale = gamma / jnp.sqrt(var + bn_eps)
        shift = beta - mean * scale
        return scale, shift

    gin = []
    for layer in range(num_layer):
        din = dim_node if layer == 0 else D
        w1, b1 = lin(next(keys), din, 2 * D)        # GINConv MLP Linear 1
        s1, t1 = bn(next(keys), 2 * D)              # GINConv MLP BatchNorm1d
        w2, b2 = lin(next(keys), 2 * D, D)          # GINConv MLP Linear 2
        s2, t2 = bn(next(keys), D)                  # encoder batch_norm(1/[i])
        gin.append((w1, b1, s1, t1, w2, b2, s2, t2))

    vw1, vb1 = lin(next(keys), D, 2 * D)            # virtual_mlp Linear 1
    vs1, vt1 = bn(next(keys), 2 * D)                # virtual_mlp BN(2D)
    vw2, vb2 = lin(next(keys), 2 * D, D)            # virtual_mlp Linear 2
    vs2, vt2 = bn(next(keys), D)                    # virtual_mlp BN(D)
    vmlp = (vw1, vb1, vs1, vt1, vw2, vb2, vs2, vt2)

    vemb = jax.random.normal(next(keys), (1, D), jnp.float32)  # Embedding(1,D)
    wc, bc = lin(next(keys), D, dim_out)                       # Classifier
    return {"gin": gin, "vmlp": vmlp, "vemb": vemb, "wc": wc, "bc": bc,
            "dims": (dim_node, D, dim_out)}


def prepare_params(raw):
    dim_node, D, dim_out = raw["dims"]
    F_pad = _round_up(dim_node, LANE)
    H_pad = _round_up(2 * D, LANE)
    D_pad = _round_up(D, LANE)
    O_pad = _round_up(dim_out, LANE)

    def fold(w1, b1, s1, t1, w2, b2, s2, t2, din_pad):
        w1f, b1f = w1 * s1, b1 * s1 + t1
        w2f, b2f = w2 * s2, b2 * s2 + t2
        return (_pad2(w1f, din_pad, H_pad).astype(jnp.bfloat16),
                _pad2(b1f, 1, H_pad),
                _pad2(w2f, H_pad, D_pad).astype(jnp.bfloat16),
                _pad2(b2f, 1, D_pad))

    gin = []
    for layer, prm in enumerate(raw["gin"]):
        gin.append(fold(*prm, F_pad if layer == 0 else D_pad))
    vmlp = fold(*raw["vmlp"], D_pad)

    return {"gin": gin, "vmlp": vmlp,
            "vemb": _pad2(raw["vemb"], 1, D_pad).astype(jnp.bfloat16),
            "wc": _pad2(raw["wc"], D_pad, O_pad).astype(jnp.bfloat16),
            "bc": _pad2(raw["bc"], 1, O_pad),
            "dims": raw["dims"]}


# ----------------------------------------------------------------------------
# vGIN forward (non-molecule branch: vGINEncoder + Classifier), eval mode.
# ----------------------------------------------------------------------------
def vgin_forward(prep, x, edge_index, batch, num_graphs, *, use_pallas=True,
                 node_tile=256):
    dim_node, D, dim_out = prep["dims"]
    num_layer = len(prep["gin"])

    N = x.shape[0]
    N_pad = _round_up(N, node_tile)
    B_pad = _round_up(max(num_graphs, 1), GRAPH_PAD)
    F_pad = prep["gin"][0][0].shape[0]
    D_pad = prep["wc"].shape[0]

    # ---- compressed tile structure of A_hat (computed ONCE, reused per layer)
    ei = np.asarray(edge_index)
    gm = gk = N_pad // node_tile
    occ = np.zeros((gm, gk), dtype=bool)
    occ[ei[1] // node_tile, ei[0] // node_tile] = True      # edges dst<-src
    diag = np.arange(N) // node_tile
    occ[diag, diag] = True                                  # self-loop term
    struct_a = _compress_tiles(occ)

    # Pool matrix P: every node tile contains real nodes -> trivial structure.
    struct_p = (np.arange(gk, dtype=np.int32), np.array([gk], np.int32), gk)

    def block(a, h, add_out, prm, struct, final_relu):
        if use_pallas:
            cols, counts, kmax = struct
            return gin_block_pallas(a, h, add_out, *prm,
                                    cols=cols, counts=counts, kmax=kmax,
                                    final_relu=final_relu,
                                    row_tile=node_tile, k_tile=node_tile)
        return gin_block_ref(a, h, add_out, *prm, final_relu=final_relu)

    readout = (functools.partial(readout_classifier_pallas, k_tile=node_tile)
               if use_pallas else readout_classifier_ref)

    src, dst = edge_index[0], edge_index[1]

    # Dense GIN operator: out_i = (1+eps)*x_i + sum_{j->i} x_j,  eps = 0.
    A_hat = (jnp.zeros((N_pad, N_pad), jnp.float32)
             .at[dst, src].add(1.0)
             .at[jnp.arange(N), jnp.arange(N)].add(1.0)).astype(jnp.bfloat16)

    # One-hot graph-assignment (global add pool) matrix; padded nodes -> 0.
    batch_pad = jnp.full((N_pad,), -1, jnp.int32).at[:N].set(batch)
    P = (batch_pad[None, :] ==
         jnp.arange(B_pad, dtype=jnp.int32)[:, None]).astype(jnp.bfloat16)

    x_pad = (jnp.zeros((N_pad, F_pad), jnp.bfloat16)
             .at[:N, :dim_node].set(x.astype(jnp.bfloat16)))

    gather_idx = jnp.clip(batch_pad, 0, num_graphs - 1)

    # virtual_node_embedding(zeros(batch_size)) -> row 0 broadcast.
    vfeat = jnp.tile(prep["vemb"], (B_pad, 1))

    # conv1 -> batch_norm1 -> relu1 -> dropout1 (identity, eval mode)
    post = block(A_hat, x_pad, None, prep["gin"][0], struct_a, True)

    n_inner = num_layer - 1
    for i in range(n_inner):
        # Pre-add virtual_node_feat[batch] once in plain JAX (single N x D pass
        # instead of re-streaming it per adjacency tile inside the kernel).
        h_in = (post + jnp.take(vfeat, gather_idx, axis=0)).astype(jnp.bfloat16)
        last = (i == n_inner - 1)
        post = block(A_hat, h_in, None, prep["gin"][i + 1], struct_a, not last)
        # dropout: identity (inference mode)
        if not last:
            # virtual_mlp(global_add_pool(post, batch) + virtual_node_feat)
            vfeat = block(P, post, vfeat, prep["vmlp"], struct_p, True)

    # readout (GlobalAddPool) + Classifier Linear, then strip padding.
    out_pad = readout(P, post, prep["wc"], prep["bc"])
    return out_pad[:num_graphs, :dim_out]


def vgin_forward_f32_reference(raw, x, edge_index, batch, num_graphs):
    """Unpadded, float32, scatter-based reference mirroring the PyTorch module
    (eval-mode BN, dropout = identity)."""
    _, D, _ = raw["dims"]
    num_layer = len(raw["gin"])
    src, dst = edge_index[0], edge_index[1]

    def aggregate(h):                 # GIN sum aggregation, eps = 0
        return h + jnp.zeros_like(h).at[dst].add(h[src])

    def mlp_block(h, prm, final_relu):
        w1, b1, s1, t1, w2, b2, s2, t2 = prm
        t = jnp.maximum((h @ w1 + b1) * s1 + t1, 0.0)
        z = (t @ w2 + b2) * s2 + t2
        return jnp.maximum(z, 0.0) if final_relu else z

    def pool(h):
        return jnp.zeros((num_graphs, D), jnp.float32).at[batch].add(h)

    vfeat = jnp.broadcast_to(raw["vemb"], (num_graphs, D))
    post = mlp_block(aggregate(x), raw["gin"][0], True)
    n_inner = num_layer - 1
    for i in range(n_inner):
        last = (i == n_inner - 1)
        post = mlp_block(aggregate(post + vfeat[batch]), raw["gin"][i + 1],
                         not last)
        if not last:
            vfeat = mlp_block(pool(post) + vfeat, raw["vmlp"], True)
    return pool(post) @ raw["wc"] + raw["bc"]


if __name__ == "__main__":
    dim_node, dim_inner, dim_out = 16, 32, 8
    num_layer = 3                      # cfg.gnn.layers_mp
    num_graphs = 2
    nodes_per_graph = 6
    N = num_graphs * nodes_per_graph

    key = jax.random.PRNGKey(0)
    kx, kp = jax.random.split(key)

    x = jax.random.normal(kx, (N, dim_node), jnp.float32)
    batch = jnp.repeat(jnp.arange(num_graphs, dtype=jnp.int32), nodes_per_graph)

    # Bidirectional ring edges inside each graph.
    src_list, dst_list = [], []
    for g in range(num_graphs):
        base = g * nodes_per_graph
        for i in range(nodes_per_graph):
            s = base + i
            d = base + (i + 1) % nodes_per_graph
            src_list += [s, d]
            dst_list += [d, s]
    edge_index = jnp.array([src_list, dst_list], dtype=jnp.int32)   # (2, 24)

    raw = init_raw_params(kp, dim_node, dim_inner, dim_out, num_layer)
    prep = prepare_params(raw)

    out = vgin_forward(prep, x, edge_index, batch, num_graphs, use_pallas=True)
    out = jax.block_until_ready(out)

    ref_matched = vgin_forward(prep, x, edge_index, batch, num_graphs,
                               use_pallas=False)
    ref_f32 = vgin_forward_f32_reference(raw, x, edge_index, batch, num_graphs)

    assert out.shape == (num_graphs, dim_out)
    assert jnp.allclose(out, ref_matched, atol=2e-2, rtol=2e-2), \
        "Pallas output mismatches matched-precision JAX reference"
    assert jnp.allclose(out, ref_f32, atol=1e-1, rtol=1e-1), \
        "Pallas output mismatches float32 PyTorch-style reference"
    print("KERNEL_OK")
</pallas_src>

<mosaic_0001>
module attributes {stable_mosaic.version = 11 : i64} {
  func.func @_gin_block_kernel(%arg0: i32, %arg1: i32, %arg2: memref<1xi32, #tpu.memory_space<smem>>, %arg3: memref<1xi32, #tpu.memory_space<smem>>, %arg4: memref<256x256xbf16, #tpu.memory_space<vmem>>, %arg5: memref<256x128xbf16, #tpu.memory_space<vmem>>, %arg6: memref<128x128xbf16, #tpu.memory_space<vmem>>, %arg7: memref<1x128xf32, #tpu.memory_space<vmem>>, %arg8: memref<128x128xbf16, #tpu.memory_space<vmem>>, %arg9: memref<1x128xf32, #tpu.memory_space<vmem>>, %arg10: memref<256x128xbf16, #tpu.memory_space<vmem>>, %arg11: memref<256x128xf32, #tpu.memory_space<vmem>>) attributes {dimension_semantics = [#tpu.dimension_semantics<parallel>, #tpu.dimension_semantics<arbitrary>], iteration_bounds = array<i64: 1, 1>, scalar_prefetch = 2 : i64, scratch_operands = 1 : i64, tpu.core_type = #tpu.core_type<tc>, window_params = [{transform_indices = @transform_0, window_bounds = array<i64: 256, 256>}, {transform_indices = @transform_1, window_bounds = array<i64: 256, 128>}, {pipeline_mode = #tpu.pipeline_mode<synchronous>, transform_indices = @transform_2, window_bounds = array<i64: 128, 128>}, {pipeline_mode = #tpu.pipeline_mode<synchronous>, transform_indices = @transform_3, window_bounds = array<i64: 1, 128>}, {pipeline_mode = #tpu.pipeline_mode<synchronous>, transform_indices = @transform_4, window_bounds = array<i64: 128, 128>}, {pipeline_mode = #tpu.pipeline_mode<synchronous>, transform_indices = @transform_5, window_bounds = array<i64: 1, 128>}, {transform_indices = @transform_6, window_bounds = array<i64: 256, 128>}]} {
    %c0_i32 = arith.constant 0 : i32
    %0 = arith.cmpi eq, %arg1, %c0_i32 : i32
    %1 = arith.extui %0 : i1 to i32
    %c0_i32_0 = arith.constant 0 : i32
    %2 = arith.cmpi ne, %1, %c0_i32_0 : i32
    scf.if %2 {
      %cst = arith.constant 0.000000e+00 : f32
      %11 = vector.broadcast %cst : f32 to vector<256x128xf32>
      %c0 = arith.constant 0 : index
      %c0_4 = arith.constant 0 : index
      %12 = vector.load %arg11[%c0, %c0_4] : memref<256x128xf32, #tpu.memory_space<vmem>>, vector<256x128xf32>
      tpu.vector_store %arg11[%c0, %c0_4], %11 {strides = array<i32>} : memref<256x128xf32, #tpu.memory_space<vmem>>, vector<256x128xf32>,
    } else {
    }
    %3 = arith.index_cast %arg0 : i32 to index
    %4 = memref.load %arg3[%3] : memref<1xi32, #tpu.memory_space<smem>>
    %5 = arith.cmpi slt, %arg1, %4 : i32
    %6 = arith.extui %5 : i1 to i32
    %c0_i32_1 = arith.constant 0 : i32
    %7 = arith.cmpi ne, %6, %c0_i32_1 : i32
    scf.if %7 {
      %c0 = arith.constant 0 : index
      %c0_4 = arith.constant 0 : index
      %11 = vector.load %arg11[%c0, %c0_4] : memref<256x128xf32, #tpu.memory_space<vmem>>, vector<256x128xf32>
      %c0_5 = arith.constant 0 : index
      %c0_6 = arith.constant 0 : index
      %12 = vector.load %arg4[%c0_5, %c0_6] : memref<256x256xbf16, #tpu.memory_space<vmem>>, vector<256x256xbf16>
      %c0_7 = arith.constant 0 : index
      %c0_8 = arith.constant 0 : index
      %13 = vector.load %arg5[%c0_7, %c0_8] : memref<256x128xbf16, #tpu.memory_space<vmem>>, vector<256x128xbf16>
      %cst = arith.constant dense<0.000000e+00> : vector<256x128xf32>
      %14 = tpu.matmul %12, %13, %cst {dimension_numbers = #tpu.dot_dimension_numbers<[1], [0], [0], [1], [0, 0, 1, 1], [], []>} : vector<256x256xbf16>, vector<256x128xbf16>, vector<256x128xf32> -> vector<256x128xf32>
      %15 = arith.addf %11, %14 : vector<256x128xf32>
      %c0_9 = arith.constant 0 : index
      %c0_10 = arith.constant 0 : index
      %16 = vector.load %arg11[%c0_9, %c0_10] : memref<256x128xf32, #tpu.memory_space<vmem>>, vector<256x128xf32>
      tpu.vector_store %arg11[%c0_9, %c0_10], %15 {strides = array<i32>} : memref<256x128xf32, #tpu.memory_space<vmem>>, vector<256x128xf32>,
    } else {
    }
    %c0_i32_2 = arith.constant 0 : i32
    %8 = arith.cmpi eq, %arg1, %c0_i32_2 : i32
    %9 = arith.extui %8 : i1 to i32
    %c0_i32_3 = arith.constant 0 : i32
    %10 = arith.cmpi ne, %9, %c0_i32_3 : i32
    scf.if %10 {
      %c0 = arith.constant 0 : index
      %c0_4 = arith.constant 0 : index
      %11 = vector.load %arg11[%c0, %c0_4] : memref<256x128xf32, #tpu.memory_space<vmem>>, vector<256x128xf32>
      %12 = arith.truncf %11 : vector<256x128xf32> to vector<256x128xbf16>
      %c0_5 = arith.constant 0 : index
      %c0_6 = arith.constant 0 : index
      %13 = vector.load %arg6[%c0_5, %c0_6] : memref<128x128xbf16, #tpu.memory_space<vmem>>, vector<128x128xbf16>
      %cst = arith.constant dense<0.000000e+00> : vector<256x128xf32>
      %14 = tpu.matmul %12, %13, %cst {dimension_numbers = #tpu.dot_dimension_numbers<[1], [0], [0], [1], [0, 0, 1, 1], [], []>} : vector<256x128xbf16>, vector<128x128xbf16>, vector<256x128xf32> -> vector<256x128xf32>
      %c0_7 = arith.constant 0 : index
      %c0_8 = arith.constant 0 : index
      %15 = vector.load %arg7[%c0_7, %c0_8] : memref<1x128xf32, #tpu.memory_space<vmem>>, vector<1x128xf32>
      %16 = vector.broadcast %15 : vector<1x128xf32> to vector<256x128xf32>
      %17 = arith.addf %14, %16 : vector<256x128xf32>
      %cst_9 = arith.constant 0.000000e+00 : f32
      %18 = vector.broadcast %cst_9 : f32 to vector<256x128xf32>
      %19 = arith.maximumf %17, %18 : vector<256x128xf32>
      %20 = arith.truncf %19 : vector<256x128xf32> to vector<256x128xbf16>
      %c0_10 = arith.constant 0 : index
      %c0_11 = arith.constant 0 : index
      %21 = vector.load %arg8[%c0_10, %c0_11] : memref<128x128xbf16, #tpu.memory_space<vmem>>, vector<128x128xbf16>
      %cst_12 = arith.constant dense<0.000000e+00> : vector<256x128xf32>
      %22 = tpu.matmul %20, %21, %cst_12 {dimension_numbers = #tpu.dot_dimension_numbers<[1], [0], [0], [1], [0, 0, 1, 1], [], []>} : vector<256x128xbf16>, vector<128x128xbf16>, vector<256x128xf32> -> vector<256x128xf32>
      %c0_13 = arith.constant 0 : index
      %c0_14 = arith.constant 0 : index
      %23 = vector.load %arg9[%c0_13, %c0_14] : memref<1x128xf32, #tpu.memory_space<vmem>>, vector<1x128xf32>
      %24 = vector.broadcast %23 : vector<1x128xf32> to vector<256x128xf32>
      %25 = arith.addf %22, %24 : vector<256x128xf32>
      %cst_15 = arith.constant 0.000000e+00 : f32
      %26 = vector.broadcast %cst_15 : f32 to vector<256x128xf32>
      %27 = arith.maximumf %25, %26 : vector<256x128xf32>
      %28 = arith.truncf %27 : vector<256x128xf32> to vector<256x128xbf16>
      %c0_16 = arith.constant 0 : index
      %c0_17 = arith.constant 0 : index
      %29 = vector.load %arg10[%c0_16, %c0_17] : memref<256x128xbf16, #tpu.memory_space<vmem>>, vector<256x128xbf16>
      tpu.vector_store %arg10[%c0_16, %c0_17], %28 {strides = array<i32>} : memref<256x128xbf16, #tpu.memory_space<vmem>>, vector<256x128xbf16>,
    } else {
    }
    return
  }
  func.func @transform_0(%arg0: i32, %arg1: i32, %arg2: memref<1xi32, #tpu.memory_space<smem>>, %arg3: memref<1xi32, #tpu.memory_space<smem>>) -> (i32, i32) {
    %c1_i32 = arith.constant 1 : i32
    %0 = arith.muli %arg0, %c1_i32 : i32
    %1 = arith.addi %0, %arg1 : i32
    %2 = arith.index_cast %1 : i32 to index
    %3 = memref.load %arg2[%2] : memref<1xi32, #tpu.memory_space<smem>>
    %c0_i32 = arith.constant 0 : i32
    return %arg0, %3 : i32, i32
  }
  func.func @transform_1(%arg0: i32, %arg1: i32, %arg2: memref<1xi32, #tpu.memory_space<smem>>, %arg3: memref<1xi32, #tpu.memory_space<smem>>) -> (i32, i32) {
    %c1_i32 = arith.constant 1 : i32
    %0 = arith.muli %arg0, %c1_i32 : i32
    %1 = arith.addi %0, %arg1 : i32
    %2 = arith.index_cast %1 : i32 to index
    %3 = memref.load %arg2[%2] : memref<1xi32, #tpu.memory_space<smem>>
    %c0_i32 = arith.constant 0 : i32
    %c0_i32_0 = arith.constant 0 : i32
    return %3, %c0_i32 : i32, i32
  }
  func.func @transform_2(%arg0: i32, %arg1: i32, %arg2: memref<1xi32, #tpu.memory_space<smem>>, %arg3: memref<1xi32, #tpu.memory_space<smem>>) -> (i32, i32) {
    %c0_i32 = arith.constant 0 : i32
    %c0_i32_0 = arith.constant 0 : i32
    %c0_i32_1 = arith.constant 0 : i32
    return %c0_i32, %c0_i32_0 : i32, i32
  }
  func.func @transform_3(%arg0: i32, %arg1: i32, %arg2: memref<1xi32, #tpu.memory_space<smem>>, %arg3: memref<1xi32, #tpu.memory_space<smem>>) -> (i32, i32) {
    %c0_i32 = arith.constant 0 : i32
    %c0_i32_0 = arith.constant 0 : i32
    %c0_i32_1 = arith.constant 0 : i32
    return %c0_i32, %c0_i32_0 : i32, i32
  }
  func.func @transform_4(%arg0: i32, %arg1: i32, %arg2: memref<1xi32, #tpu.memory_space<smem>>, %arg3: memref<1xi32, #tpu.memory_space<smem>>) -> (i32, i32) {
    %c0_i32 = arith.constant 0 : i32
    %c0_i32_0 = arith.constant 0 : i32
    %c0_i32_1 = arith.constant 0 : i32
    return %c0_i32, %c0_i32_0 : i32, i32
  }
  func.func @transform_5(%arg0: i32, %arg1: i32, %arg2: memref<1xi32, #tpu.memory_space<smem>>, %arg3: memref<1xi32, #tpu.memory_space<smem>>) -> (i32, i32) {
    %c0_i32 = arith.constant 0 : i32
    %c0_i32_0 = arith.constant 0 : i32
    %c0_i32_1 = arith.constant 0 : i32
    return %c0_i32, %c0_i32_0 : i32, i32
  }
  func.func @transform_6(%arg0: i32, %arg1: i32, %arg2: memref<1xi32, #tpu.memory_space<smem>>, %arg3: memref<1xi32, #tpu.memory_space<smem>>) -> (i32, i32) {
    %c0_i32 = arith.constant 0 : i32
    %c0_i32_0 = arith.constant 0 : i32
    return %arg0, %c0_i32 : i32, i32
  }
}

</mosaic_0001>

<llo_original>
// kernel: tpu_custom_call.1
$region0: #{tpu_custom_call.1}
  #allocation0 [shape = 'u32[]', space=smem, size = 0x4, offset = 0x4, fixed_abs, tag = 'smem constant byte address 0x4 - core index']
  #allocation1 [shape = 'u32[144,128]{1,0:T(1,128)}', space=vmem, size = 0x12000, scoped, tag = 'internal scratch']
  #allocation2 [shape = 'f32[256,128]{1,0:T(8,128)}', space=vmem, size = 0x20000, scoped, tag = 'scratch operand']
  #allocation3 [shape = 's32[1]{0}', space=sflag, size = 0x4, scoped, tag = 'scoped memory for tpu_custom_call.1']
  #allocation4 [shape = 's32[1]{0:T(128)S(6)}', space=smem, size = 0x200, scoped, tag = 'prefetched SMEM operand 0']
  #allocation5 [shape = 's32[1]{0:T(128)S(6)}', space=smem, size = 0x200, scoped, tag = 'prefetched SMEM operand 1']
  %s0 = inlined_call_operand.<no memory space> [shape: s32[1], index: 0, kind: input, shape index: {}]
  %s1 = inlined_call_operand.<no memory space> [shape: s32[1], index: 1, kind: input, shape index: {}]
  %s2 = inlined_call_operand.hbm [shape: bf16[256,256], index: 2, kind: input, shape index: {}]
  %s3 = inlined_call_operand.hbm [shape: bf16[256,128], index: 3, kind: input, shape index: {}]
  %s4 = inlined_call_operand.hbm [shape: bf16[128,128], index: 4, kind: input, shape index: {}]
  %s5 = inlined_call_operand.vmem [shape: f32[1,128], index: 5, kind: input, shape index: {}]
  %s6 = inlined_call_operand.hbm [shape: bf16[128,128], index: 6, kind: input, shape index: {}]
  %s7 = inlined_call_operand.vmem [shape: f32[1,128], index: 7, kind: input, shape index: {}]
  %s8 = inlined_call_operand.hbm [shape: bf16[256,128], index: 8, kind: output, shape index: {}]
  %s9 = sld [smem:[#allocation0]]
  $region62: #{tpu_custom_call.1} parent=0
    _
  %s11 = ssub.s32 1, %s9
  %s12 = scalar_select 0, %s11, %s9
  %13 = sst [smem:[#allocation4]] %s0
  %14 = sst [smem:[#allocation5]] %s1
  $region1: #{tpu_custom_call.1} parent=0
    #allocation6 [shape = 'u8[131072]{0}', space=vmem, size = 0x20000, scoped, tag = 'input window, operand 2, single buffered']
    #allocation7 [shape = 's32[1]{0}', space=sflag, size = 0x4, scoped, tag = 'scoped memory for tpu_custom_call.1']
    #allocation8 [shape = 's32[1]{0}', space=sflag, size = 0x4, scoped, tag = 'scoped memory for tpu_custom_call.1']
    #allocation9 [shape = 'u8[65536]{0}', space=vmem, size = 0x10000, scoped, tag = 'input window, operand 3, single buffered']
    #allocation10 [shape = 's32[1]{0}', space=sflag, size = 0x4, scoped, tag = 'scoped memory for tpu_custom_call.1']
    #allocation11 [shape = 'u8[32768]{0}', space=vmem, size = 0x8000, scoped, tag = 'input window, operand 4, single buffered']
    #allocation12 [shape = 'u8[32768]{0}', space=vmem, size = 0x8000, scoped, tag = 'input window, operand 6, single buffered']
    #allocation13 [shape = 's32[1]{0}', space=sflag, size = 0x4, scoped, tag = 'scoped memory for tpu_custom_call.1']
    #allocation14 [shape = 'u8[65536]{0}', space=vmem, size = 0x10000, scoped, tag = 'output window, operand 0, single buffered']
    %15 = vsyncpa [#allocation7], 0
    %16 = vsyncpa [#allocation10], 0
    %17 = vsyncpa [#allocation13], 0
    %18 = vsyncpa [#allocation8], 0
    // Predicated region
    $region2: #{tpu_custom_call.1} parent=1 // pred_check
      _
    $region3: #{tpu_custom_call.1} parent=1 // pred_check_branch
      %20 = sbr.rel (0) target = $region5
    $region4: #{tpu_custom_call.1} parent=1 // pred_region
      %s21 = sadd.s32 0, 0
      %s22 = sld [smem:[#allocation4 + %s21]]
      %s23 = smul.u32 2, %s22
      %s25 = ssub.s32 4096, 4096
      %26 = vsyncadd [#allocation7], %s25
      %s27 = smul.addr %s23, 64
      %s28 = scalar_lea.hbm %s2, %s27
      %s29 = sshll.u32 [#allocation6], 4
      %s30 = int_to_ptr.vmem [resolvable:$true] %s29
      %35 = dma.hbm_to_vmem [thread:$0]  %s28, 4096, %s30, [#allocation7], 128, 128, 8
    $region5: #{tpu_custom_call.1} parent=1 // pred_fallthru
      _
    // Predicated region
    $region6: #{tpu_custom_call.1} parent=1 // pred_check
      _
    $region7: #{tpu_custom_call.1} parent=1 // pred_check_branch
      %37 = sbr.rel (0) target = $region9
    $region8: #{tpu_custom_call.1} parent=1 // pred_region
      %s38 = sadd.s32 0, 0
      %s39 = sld [smem:[#allocation4 + %s38]]
      %s40 = smul.u32 32, %s39
      %s42 = ssub.s32 2048, 2048
      %43 = vsyncadd [#allocation10], %s42
      %s44 = smul.addr %s40, 64
      %s45 = scalar_lea.hbm %s3, %s44
      %s46 = sshll.u32 [#allocation9], 4
      %s47 = int_to_ptr.vmem [resolvable:$true] %s46
      %52 = dma.hbm_to_vmem [thread:$0]  %s45, 2048, %s47, [#allocation10], 64, 64, 4
    $region9: #{tpu_custom_call.1} parent=1 // pred_fallthru
      _
    // Predicated region
    $region10: #{tpu_custom_call.1} parent=1 // pred_check
      _
    $region11: #{tpu_custom_call.1} parent=1 // pred_check_branch
      %54 = sbr.rel (0) target = $region13
    $region12: #{tpu_custom_call.1} parent=1 // pred_region
      %s56 = ssub.s32 1024, 1024
      %57 = vsyncadd [#allocation10], %s56
      %s58 = sshll.u32 [#allocation11], 4
      %s59 = int_to_ptr.vmem [resolvable:$true] %s58
      %64 = dma.hbm_to_vmem [thread:$0]  %s4, 1024, %s59, [#allocation10], 64, 64, 4
    $region13: #{tpu_custom_call.1} parent=1 // pred_fallthru
      _
    // Predicated region
    $region14: #{tpu_custom_call.1} parent=1 // pred_check
      _
    $region15: #{tpu_custom_call.1} parent=1 // pred_check_branch
      %66 = sbr.rel (0) target = $region17
    $region16: #{tpu_custom_call.1} parent=1 // pred_region
      _
    $region17: #{tpu_custom_call.1} parent=1 // pred_fallthru
      _
    // Predicated region
    $region18: #{tpu_custom_call.1} parent=1 // pred_check
      _
    $region19: #{tpu_custom_call.1} parent=1 // pred_check_branch
      %68 = sbr.rel (0) target = $region21
    $region20: #{tpu_custom_call.1} parent=1 // pred_region
      %s70 = ssub.s32 1024, 1024
      %71 = vsyncadd [#allocation13], %s70
      %s72 = sshll.u32 [#allocation12], 4
      %s73 = int_to_ptr.vmem [resolvable:$true] %s72
      %78 = dma.hbm_to_vmem [thread:$0]  %s6, 1024, %s73, [#allocation13], 64, 64, 4
    $region21: #{tpu_custom_call.1} parent=1 // pred_fallthru
      _
    // Predicated region
    $region22: #{tpu_custom_call.1} parent=1 // pred_check
      _
    $region23: #{tpu_custom_call.1} parent=1 // pred_check_branch
      %80 = sbr.rel (0) target = $region25
    $region24: #{tpu_custom_call.1} parent=1 // pred_region
      _
    $region25: #{tpu_custom_call.1} parent=1 // pred_fallthru
      _
    // Predicated region
    $region26: #{tpu_custom_call.1} parent=1 // pred_check
      _
    $region27: #{tpu_custom_call.1} parent=1 // pred_check_branch
      %82 = sbr.rel (0) target = $region29
    $region28: #{tpu_custom_call.1} parent=1 // pred_region
      %83 = dma.done [#allocation7], 4096
    $region29: #{tpu_custom_call.1} parent=1 // pred_fallthru
      _
    // Predicated region
    $region30: #{tpu_custom_call.1} parent=1 // pred_check
      _
    $region31: #{tpu_custom_call.1} parent=1 // pred_check_branch
      %85 = sbr.rel (0) target = $region33
    $region32: #{tpu_custom_call.1} parent=1 // pred_region
      %86 = dma.done [#allocation10], 2048
    $region33: #{tpu_custom_call.1} parent=1 // pred_fallthru
      _
    // Predicated region
    $region34: #{tpu_custom_call.1} parent=1 // pred_check
      _
    $region35: #{tpu_custom_call.1} parent=1 // pred_check_branch
      %88 = sbr.rel (0) target = $region37
    $region36: #{tpu_custom_call.1} parent=1 // pred_region
      %89 = dma.done [#allocation10], 1024
    $region37: #{tpu_custom_call.1} parent=1 // pred_fallthru
      _
    // Predicated region
    $region38: #{tpu_custom_call.1} parent=1 // pred_check
      _
    $region39: #{tpu_custom_call.1} parent=1 // pred_check_branch
      %91 = sbr.rel (0) target = $region41
    $region40: #{tpu_custom_call.1} parent=1 // pred_region
      %92 = dma.done [#allocation13], 1024
    $region41: #{tpu_custom_call.1} parent=1 // pred_fallthru
      _
    %s93 = sadd.s32 0, 0
    %s94 = sld [smem:[#allocation4 + %s93]]
    %s95 = smul.u32 2, %s94
    %s96 = sadd.s32 0, 0
    %s97 = sld [smem:[#allocation4 + %s96]]
    %s98 = smul.u32 32, %s97
    %p100 = scmp.eq.s32.totalorder 0, 0
    // Predicated region
    $region42: #{tpu_custom_call.1} parent=1 // pred_check
      %p101 = pneg %p100
    $region43: #{tpu_custom_call.1} parent=1 // pred_check_branch
      %103 = sbr.rel (%p101) target = $region45
    $region44: #{tpu_custom_call.1} parent=1 // pred_region
      %104 = vst [vmem:[#allocation2] sm:$0xff] 0.0
      %105 = vst [vmem:[#allocation2 + $0x8] sm:$0xff] 0.0
      %106 = vst [vmem:[#allocation2 + $0x10] sm:$0xff] 0.0
      %107 = vst [vmem:[#allocation2 + $0x18] sm:$0xff] 0.0
      %108 = vst [vmem:[#allocation2 + $0x20] sm:$0xff] 0.0
      %109 = vst [vmem:[#allocation2 + $0x28] sm:$0xff] 0.0
      %110 = vst [vmem:[#allocation2 + $0x30] sm:$0xff] 0.0
      %111 = vst [vmem:[#allocation2 + $0x38] sm:$0xff] 0.0
      %112 = vst [vmem:[#allocation2 + $0x40] sm:$0xff] 0.0
      %113 = vst [vmem:[#allocation2 + $0x48] sm:$0xff] 0.0
      %114 = vst [vmem:[#allocation2 + $0x50] sm:$0xff] 0.0
      %115 = vst [vmem:[#allocation2 + $0x58] sm:$0xff] 0.0
      %116 = vst [vmem:[#allocation2 + $0x60] sm:$0xff] 0.0
      %117 = vst [vmem:[#allocation2 + $0x68] sm:$0xff] 0.0
      %118 = vst [vmem:[#allocation2 + $0x70] sm:$0xff] 0.0
      %119 = vst [vmem:[#allocation2 + $0x78] sm:$0xff] 0.0
      %120 = vst [vmem:[#allocation2 + $0x80] sm:$0xff] 0.0
      %121 = vst [vmem:[#allocation2 + $0x88] sm:$0xff] 0.0
      %122 = vst [vmem:[#allocation2 + $0x90] sm:$0xff] 0.0
      %123 = vst [vmem:[#allocation2 + $0x98] sm:$0xff] 0.0
      %124 = vst [vmem:[#allocation2 + $0xa0] sm:$0xff] 0.0
      %125 = vst [vmem:[#allocation2 + $0xa8] sm:$0xff] 0.0
      %126 = vst [vmem:[#allocation2 + $0xb0] sm:$0xff] 0.0
      %127 = vst [vmem:[#allocation2 + $0xb8] sm:$0xff] 0.0
      %128 = vst [vmem:[#allocation2 + $0xc0] sm:$0xff] 0.0
      %129 = vst [vmem:[#allocation2 + $0xc8] sm:$0xff] 0.0
      %130 = vst [vmem:[#allocation2 + $0xd0] sm:$0xff] 0.0
      %131 = vst [vmem:[#allocation2 + $0xd8] sm:$0xff] 0.0
      %132 = vst [vmem:[#allocation2 + $0xe0] sm:$0xff] 0.0
      %133 = vst [vmem:[#allocation2 + $0xe8] sm:$0xff] 0.0
      %134 = vst [vmem:[#allocation2 + $0xf0] sm:$0xff] 0.0
      %135 = vst [vmem:[#allocation2 + $0xf8] sm:$0xff] 0.0
    $region45: #{tpu_custom_call.1} parent=1 // pred_fallthru
      _
    %s136 = sld [smem:[#allocation5]]
    %p137 = scmp.lt.s32.totalorder 0, %s136
    // Predicated region
    $region46: #{tpu_custom_call.1} parent=1 // pred_check
      %p138 = pneg %p137
    $region47: #{tpu_custom_call.1} parent=1 // pred_check_branch
      %140 = sbr.rel (%p138) target = $region49
    $region48: #{tpu_custom_call.1} parent=1 // pred_region
      %v141 = vld [vmem:[#allocation2] sm:$0xff]
      %v142 = vld [vmem:[#allocation2 + $0x8] sm:$0xff]
      %v143 = vld [vmem:[#allocation2 + $0x10] sm:$0xff]
      %v144 = vld [vmem:[#allocation2 + $0x18] sm:$0xff]
      %v145 = vld [vmem:[#allocation2 + $0x20] sm:$0xff]
      %v146 = vld [vmem:[#allocation2 + $0x28] sm:$0xff]
      %v147 = vld [vmem:[#allocation2 + $0x30] sm:$0xff]
      %v148 = vld [vmem:[#allocation2 + $0x38] sm:$0xff]
      %v149 = vld [vmem:[#allocation2 + $0x40] sm:$0xff]
      %v150 = vld [vmem:[#allocation2 + $0x48] sm:$0xff]
      %v151 = vld [vmem:[#allocation2 + $0x50] sm:$0xff]
      %v152 = vld [vmem:[#allocation2 + $0x58] sm:$0xff]
      %v153 = vld [vmem:[#allocation2 + $0x60] sm:$0xff]
      %v154 = vld [vmem:[#allocation2 + $0x68] sm:$0xff]
      %v155 = vld [vmem:[#allocation2 + $0x70] sm:$0xff]
      %v156 = vld [vmem:[#allocation2 + $0x78] sm:$0xff]
      %v157 = vld [vmem:[#allocation2 + $0x80] sm:$0xff]
      %v158 = vld [vmem:[#allocation2 + $0x88] sm:$0xff]
      %v159 = vld [vmem:[#allocation2 + $0x90] sm:$0xff]
      %v160 = vld [vmem:[#allocation2 + $0x98] sm:$0xff]
      %v161 = vld [vmem:[#allocation2 + $0xa0] sm:$0xff]
      %v162 = vld [vmem:[#allocation2 + $0xa8] sm:$0xff]
      %v163 = vld [vmem:[#allocation2 + $0xb0] sm:$0xff]
      %v164 = vld [vmem:[#allocation2 + $0xb8] sm:$0xff]
      %v165 = vld [vmem:[#allocation2 + $0xc0] sm:$0xff]
      %v166 = vld [vmem:[#allocation2 + $0xc8] sm:$0xff]
      %v167 = vld [vmem:[#allocation2 + $0xd0] sm:$0xff]
      %v168 = vld [vmem:[#allocation2 + $0xd8] sm:$0xff]
      %v169 = vld [vmem:[#allocation2 + $0xe0] sm:$0xff]
      %v170 = vld [vmem:[#allocation2 + $0xe8] sm:$0xff]
      %v171 = vld [vmem:[#allocation2 + $0xf0] sm:$0xff]
      %v172 = vld [vmem:[#allocation2 + $0xf8] sm:$0xff]
      %v173 = vld [vmem:[#allocation6] sm:$0xff]
      %v174 = vld [vmem:[#allocation6 + $0x8] sm:$0xff]
      %v175 = vld [vmem:[#allocation6 + $0x10] sm:$0xff]
      %v176 = vld [vmem:[#allocation6 + $0x18] sm:$0xff]
      %v177 = vld [vmem:[#allocation6 + $0x20] sm:$0xff]
      %v178 = vld [vmem:[#allocation6 + $0x28] sm:$0xff]
      %v179 = vld [vmem:[#allocation6 + $0x30] sm:$0xff]
      %v180 = vld [vmem:[#allocation6 + $0x38] sm:$0xff]
      %v181 = vld [vmem:[#allocation6 + $0x40] sm:$0xff]
      %v182 = vld [vmem:[#allocation6 + $0x48] sm:$0xff]
      %v183 = vld [vmem:[#allocation6 + $0x50] sm:$0xff]
      %v184 = vld [vmem:[#allocation6 + $0x58] sm:$0xff]
      %v185 = vld [vmem:[#allocation6 + $0x60] sm:$0xff]
      %v186 = vld [vmem:[#allocation6 + $0x68] sm:$0xff]
      %v187 = vld [vmem:[#allocation6 + $0x70] sm:$0xff]
      %v188 = vld [vmem:[#allocation6 + $0x78] sm:$0xff]
      %v189 = vld [vmem:[#allocation6 + $0x80] sm:$0xff]
      %v190 = vld [vmem:[#allocation6 + $0x88] sm:$0xff]
      %v191 = vld [vmem:[#allocation6 + $0x90] sm:$0xff]
      %v192 = vld [vmem:[#allocation6 + $0x98] sm:$0xff]
      %v193 = vld [vmem:[#allocation6 + $0xa0] sm:$0xff]
      %v194 = vld [vmem:[#allocation6 + $0xa8] sm:$0xff]
      %v195 = vld [vmem:[#allocation6 + $0xb0] sm:$0xff]
      %v196 = vld [vmem:[#allocation6 + $0xb8] sm:$0xff]
      %v197 = vld [vmem:[#allocation6 + $0xc0] sm:$0xff]
      %v198 = vld [vmem:[#allocation6 + $0xc8] sm:$0xff]
      %v199 = vld [vmem:[#allocation6 + $0xd0] sm:$0xff]
      %v200 = vld [vmem:[#allocation6 + $0xd8] sm:$0xff]
      %v201 = vld [vmem:[#allocation6 + $0xe0] sm:$0xff]
      %v202 = vld [vmem:[#allocation6 + $0xe8] sm:$0xff]
      %v203 = vld [vmem:[#allocation6 + $0xf0] sm:$0xff]
      %v204 = vld [vmem:[#allocation6 + $0xf8] sm:$0xff]
      %v205 = vld [vmem:[#allocation9] sm:$0xf]
      %v206 = vld [vmem:[#allocation9 + $0x4] sm:$0xf]
      %v207 = vld [vmem:[#allocation9 + $0x8] sm:$0xf]
      %v208 = vld [vmem:[#allocation9 + $0xc] sm:$0xf]
      %v209 = vld [vmem:[#allocation9 + $0x10] sm:$0xf]
      %v210 = vld [vmem:[#allocation9 + $0x14] sm:$0xf]
      %v211 = vld [vmem:[#allocation9 + $0x18] sm:$0xf]
      %v212 = vld [vmem:[#allocation9 + $0x1c] sm:$0xf]
      %v213 = vld [vmem:[#allocation9 + $0x20] sm:$0xf]
      %v214 = vld [vmem:[#allocation9 + $0x24] sm:$0xf]
      %v215 = vld [vmem:[#allocation9 + $0x28] sm:$0xf]
      %v216 = vld [vmem:[#allocation9 + $0x2c] sm:$0xf]
      %v217 = vld [vmem:[#allocation9 + $0x30] sm:$0xf]
      %v218 = vld [vmem:[#allocation9 + $0x34] sm:$0xf]
      %v219 = vld [vmem:[#allocation9 + $0x38] sm:$0xf]
      %v220 = vld [vmem:[#allocation9 + $0x3c] sm:$0xf]
      %v221 = vld [vmem:[#allocation9 + $0x40] sm:$0xf]
      %v222 = vld [vmem:[#allocation9 + $0x44] sm:$0xf]
      %v223 = vld [vmem:[#allocation9 + $0x48] sm:$0xf]
      %v224 = vld [vmem:[#allocation9 + $0x4c] sm:$0xf]
      %v225 = vld [vmem:[#allocation9 + $0x50] sm:$0xf]
      %v226 = vld [vmem:[#allocation9 + $0x54] sm:$0xf]
      %v227 = vld [vmem:[#allocation9 + $0x58] sm:$0xf]
      %v228 = vld [vmem:[#allocation9 + $0x5c] sm:$0xf]
      %v229 = vld [vmem:[#allocation9 + $0x60] sm:$0xf]
      %v230 = vld [vmem:[#allocation9 + $0x64] sm:$0xf]
      %v231 = vld [vmem:[#allocation9 + $0x68] sm:$0xf]
      %v232 = vld [vmem:[#allocation9 + $0x6c] sm:$0xf]
      %v233 = vld [vmem:[#allocation9 + $0x70] sm:$0xf]
      %v234 = vld [vmem:[#allocation9 + $0x74] sm:$0xf]
      %v235 = vld [vmem:[#allocation9 + $0x78] sm:$0xf]
      %v236 = vld [vmem:[#allocation9 + $0x7c] sm:$0xf]
      %v269 = vunpack.c.l.b16 %v173
      %v270 = vunpack.c.h.b16 %v173
      %v271 = vunpack.c.l.b16 %v174
      %v272 = vunpack.c.h.b16 %v174
      %v273 = vunpack.c.l.b16 %v175
      %v274 = vunpack.c.h.b16 %v175
      %v275 = vunpack.c.l.b16 %v176
      %v276 = vunpack.c.h.b16 %v176
      %v277 = vunpack.c.l.b16 %v177
      %v278 = vunpack.c.h.b16 %v177
      %v279 = vunpack.c.l.b16 %v178
      %v280 = vunpack.c.h.b16 %v178
      %v281 = vunpack.c.l.b16 %v179
      %v282 = vunpack.c.h.b16 %v179
      %v283 = vunpack.c.l.b16 %v180
      %v284 = vunpack.c.h.b16 %v180
      %v285 = vunpack.c.l.b16 %v181
      %v286 = vunpack.c.h.b16 %v181
      %v287 = vunpack.c.l.b16 %v182
      %v288 = vunpack.c.h.b16 %v182
      %v289 = vunpack.c.l.b16 %v183
      %v290 = vunpack.c.h.b16 %v183
      %v291 = vunpack.c.l.b16 %v184
      %v292 = vunpack.c.h.b16 %v184
      %v293 = vunpack.c.l.b16 %v185
      %v294 = vunpack.c.h.b16 %v185
      %v295 = vunpack.c.l.b16 %v186
      %v296 = vunpack.c.h.b16 %v186
      %v297 = vunpack.c.l.b16 %v187
      %v298 = vunpack.c.h.b16 %v187
      %v299 = vunpack.c.l.b16 %v188
      %v300 = vunpack.c.h.b16 %v188
      %v301 = vunpack.c.l.b16 %v189
      %v302 = vunpack.c.h.b16 %v189
      %v303 = vunpack.c.l.b16 %v190
      %v304 = vunpack.c.h.b16 %v190
      %v305 = vunpack.c.l.b16 %v191
      %v306 = vunpack.c.h.b16 %v191
      %v307 = vunpack.c.l.b16 %v192
      %v308 = vunpack.c.h.b16 %v192
      %v309 = vunpack.c.l.b16 %v193
      %v310 = vunpack.c.h.b16 %v193
      %v311 = vunpack.c.l.b16 %v194
      %v312 = vunpack.c.h.b16 %v194
      %v313 = vunpack.c.l.b16 %v195
      %v314 = vunpack.c.h.b16 %v195
      %v315 = vunpack.c.l.b16 %v196
      %v316 = vunpack.c.h.b16 %v196
      %v317 = vunpack.c.l.b16 %v197
      %v318 = vunpack.c.h.b16 %v197
      %v319 = vunpack.c.l.b16 %v198
      %v320 = vunpack.c.h.b16 %v198
      %v321 = vunpack.c.l.b16 %v199
      %v322 = vunpack.c.h.b16 %v199
      %v323 = vunpack.c.l.b16 %v200
      %v324 = vunpack.c.h.b16 %v200
      %v325 = vunpack.c.l.b16 %v201
      %v326 = vunpack.c.h.b16 %v201
      %v327 = vunpack.c.l.b16 %v202
      %v328 = vunpack.c.h.b16 %v202
      %v329 = vunpack.c.l.b16 %v203
      %v330 = vunpack.c.h.b16 %v203
      %v331 = vunpack.c.l.b16 %v204
      %v332 = vunpack.c.h.b16 %v204
      %v333 = vpack.c.b16 %v271, %v269
      %v334 = vpack.c.b16 %v272, %v270
      %v335 = vpack.c.b16 %v275, %v273
      %v336 = vpack.c.b16 %v276, %v274
      %v337 = vpack.c.b16 %v279, %v277
      %v338 = vpack.c.b16 %v280, %v278
      %v339 = vpack.c.b16 %v283, %v281
      %v340 = vpack.c.b16 %v284, %v282
      %v341 = vpack.c.b16 %v287, %v285
      %v342 = vpack.c.b16 %v288, %v286
      %v343 = vpack.c.b16 %v291, %v289
      %v344 = vpack.c.b16 %v292, %v290
      %v345 = vpack.c.b16 %v295, %v293
      %v346 = vpack.c.b16 %v296, %v294
      %v347 = vpack.c.b16 %v299, %v297
      %v348 = vpack.c.b16 %v300, %v298
      %v349 = vpack.c.b16 %v303, %v301
      %v350 = vpack.c.b16 %v304, %v302
      %v351 = vpack.c.b16 %v307, %v305
      %v352 = vpack.c.b16 %v308, %v306
      %v353 = vpack.c.b16 %v311, %v309
      %v354 = vpack.c.b16 %v312, %v310
      %v355 = vpack.c.b16 %v315, %v313
      %v356 = vpack.c.b16 %v316, %v314
      %v357 = vpack.c.b16 %v319, %v317
      %v358 = vpack.c.b16 %v320, %v318
      %v359 = vpack.c.b16 %v323, %v321
      %v360 = vpack.c.b16 %v324, %v322
      %v361 = vpack.c.b16 %v327, %v325
      %v362 = vpack.c.b16 %v328, %v326
      %v363 = vpack.c.b16 %v331, %v329
      %v364 = vpack.c.b16 %v332, %v330
      %v429 = vunpack.c.l.b16 %v205
      %v430 = vunpack.c.l.b16 %v206
      %v431 = vunpack.c.l.b16 %v207
      %v432 = vunpack.c.l.b16 %v208
      %v433 = vunpack.c.l.b16 %v209
      %v434 = vunpack.c.l.b16 %v210
      %v435 = vunpack.c.l.b16 %v211
      %v436 = vunpack.c.l.b16 %v212
      %v437 = vunpack.c.l.b16 %v213
      %v438 = vunpack.c.l.b16 %v214
      %v439 = vunpack.c.l.b16 %v215
      %v440 = vunpack.c.l.b16 %v216
      %v441 = vunpack.c.l.b16 %v217
      %v442 = vunpack.c.l.b16 %v218
      %v443 = vunpack.c.l.b16 %v219
      %v444 = vunpack.c.l.b16 %v220
      %v445 = vunpack.c.l.b16 %v221
      %v446 = vunpack.c.l.b16 %v222
      %v447 = vunpack.c.l.b16 %v223
      %v448 = vunpack.c.l.b16 %v224
      %v449 = vunpack.c.l.b16 %v225
      %v450 = vunpack.c.l.b16 %v226
      %v451 = vunpack.c.l.b16 %v227
      %v452 = vunpack.c.l.b16 %v228
      %v453 = vunpack.c.l.b16 %v229
      %v454 = vunpack.c.l.b16 %v230
      %v455 = vunpack.c.l.b16 %v231
      %v456 = vunpack.c.l.b16 %v232
      %v457 = vunpack.c.l.b16 %v233
      %v458 = vunpack.c.l.b16 %v234
      %v459 = vunpack.c.l.b16 %v235
      %v460 = vunpack.c.l.b16 %v236
      %v461 = vpack.c.b16 %v430, %v429
      %v462 = vpack.c.b16 %v432, %v431
      %v463 = vpack.c.b16 %v434, %v433
      %v464 = vpack.c.b16 %v436, %v435
      %v465 = vpack.c.b16 %v438, %v437
      %v466 = vpack.c.b16 %v440, %v439
      %v467 = vpack.c.b16 %v442, %v441
      %v468 = vpack.c.b16 %v444, %v443
      %v469 = vpack.c.b16 %v446, %v445
      %v470 = vpack.c.b16 %v448, %v447
      %v471 = vpack.c.b16 %v450, %v449
      %v472 = vpack.c.b16 %v452, %v451
      %v473 = vpack.c.b16 %v454, %v453
      %v474 = vpack.c.b16 %v456, %v455
      %v475 = vpack.c.b16 %v458, %v457
      %v476 = vpack.c.b16 %v460, %v459
      %493 = vmatprep.subr.bf16.mxu0 0
      %494 = vmatpush1.bf16.msra.mxu0 %v468
      %495 = vmatprep.subr.bf16.mxu0 0
      %496 = vmatpush1.bf16.msra.mxu0 %v467
      %497 = vmatprep.subr.bf16.mxu0 0
      %498 = vmatpush1.bf16.msra.mxu0 %v466
      %499 = vmatprep.subr.bf16.mxu0 0
      %500 = vmatpush1.bf16.msra.mxu0 %v465
      %501 = vmatprep.subr.bf16.mxu0 0
      %502 = vmatpush1.bf16.msra.mxu0 %v464
      %503 = vmatprep.subr.bf16.mxu0 0
      %504 = vmatpush1.bf16.msra.mxu0 %v463
      %505 = vmatprep.subr.bf16.mxu0 0
      %506 = vmatpush1.bf16.msra.mxu0 %v462
      %507 = vmatprep.subr.bf16.mxu0 0
      %508 = vmatpush1.bf16.msra.mxu0 %v461
      %509 = vmatprep.subr.bf16.mxu0 0
      %510 = vmatpush2.bf16.msra.mxu0 %v476
      %511 = vmatprep.subr.bf16.mxu0 0
      %512 = vmatpush2.bf16.msra.mxu0 %v475
      %513 = vmatprep.subr.bf16.mxu0 0
      %514 = vmatpush2.bf16.msra.mxu0 %v474
      %515 = vmatprep.subr.bf16.mxu0 0
      %516 = vmatpush2.bf16.msra.mxu0 %v473
      %517 = vmatprep.subr.bf16.mxu0 0
      %518 = vmatpush2.bf16.msra.mxu0 %v472
      %519 = vmatprep.subr.bf16.mxu0 0
      %520 = vmatpush2.bf16.msra.mxu0 %v471
      %521 = vmatprep.subr.bf16.mxu0 0
      %522 = vmatpush2.bf16.msra.mxu0 %v470
      %523 = vmatprep.subr.bf16.mxu0 0
      %524 = vmatpush2.bf16.msra.mxu0 %v469
      %525 = vmatprep.mubr.bf16.mxu0 %v334
      %526 = vmatmul.mubr.bf16.gmra.mxu0 %v333
      %v527 = vpop.f32.mrf.mxu0
      %v528 = vadd.f32 0.0, %v527
      %v529 = vpop.f32.mrf.mxu0
      %v530 = vpop.f32.mrf.mxu0
      %v531 = vadd.f32 0.0, %v530
      %v532 = vpop.f32.mrf.mxu0
      %533 = vmatprep.mubr.bf16.mxu0 %v336
      %534 = vmatmul.mubr.bf16.gmra.mxu0 %v335
      %v535 = vpop.f32.mrf.mxu0
      %v536 = vadd.f32 0.0, %v535
      %v537 = vpop.f32.mrf.mxu0
      %v538 = vpop.f32.mrf.mxu0
      %v539 = vadd.f32 0.0, %v538
      %v540 = vpop.f32.mrf.mxu0
      %541 = vmatprep.mubr.bf16.mxu0 %v338
      %542 = vmatmul.mubr.bf16.gmra.mxu0 %v337
      %v543 = vpop.f32.mrf.mxu0
      %v544 = vadd.f32 0.0, %v543
      %v545 = vpop.f32.mrf.mxu0
      %v546 = vpop.f32.mrf.mxu0
      %v547 = vadd.f32 0.0, %v546
      %v548 = vpop.f32.mrf.mxu0
      %549 = vmatprep.mubr.bf16.mxu0 %v340
      %550 = vmatmul.mubr.bf16.gmra.mxu0 %v339
      %v551 = vpop.f32.mrf.mxu0
      %v552 = vadd.f32 0.0, %v551
      %v553 = vpop.f32.mrf.mxu0
      %v554 = vpop.f32.mrf.mxu0
      %v555 = vadd.f32 0.0, %v554
      %v556 = vpop.f32.mrf.mxu0
      %557 = vmatprep.mubr.bf16.mxu0 %v342
      %558 = vmatmul.mubr.bf16.gmra.mxu0 %v341
      %v559 = vpop.f32.mrf.mxu0
      %v560 = vadd.f32 0.0, %v559
      %v561 = vpop.f32.mrf.mxu0
      %v562 = vpop.f32.mrf.mxu0
      %v563 = vadd.f32 0.0, %v562
      %v564 = vpop.f32.mrf.mxu0
      %565 = vmatprep.mubr.bf16.mxu0 %v344
      %566 = vmatmul.mubr.bf16.gmra.mxu0 %v343
      %v567 = vpop.f32.mrf.mxu0
      %v568 = vadd.f32 0.0, %v567
      %v569 = vpop.f32.mrf.mxu0
      %v570 = vpop.f32.mrf.mxu0
      %v571 = vadd.f32 0.0, %v570
      %v572 = vpop.f32.mrf.mxu0
      %573 = vmatprep.mubr.bf16.mxu0 %v346
      %574 = vmatmul.mubr.bf16.gmra.mxu0 %v345
      %v575 = vpop.f32.mrf.mxu0
      %v576 = vadd.f32 0.0, %v575
      %v577 = vpop.f32.mrf.mxu0
      %v578 = vpop.f32.mrf.mxu0
      %v579 = vadd.f32 0.0, %v578
      %v580 = vpop.f32.mrf.mxu0
      %581 = vmatprep.mubr.bf16.mxu0 %v348
      %582 = vmatmul.mubr.bf16.gmra.mxu0 %v347
      %v583 = vpop.f32.mrf.mxu0
      %v584 = vadd.f32 0.0, %v583
      %v585 = vpop.f32.mrf.mxu0
      %v586 = vpop.f32.mrf.mxu0
      %v587 = vadd.f32 0.0, %v586
      %v588 = vpop.f32.mrf.mxu0
      %589 = vmatprep.mubr.bf16.mxu0 %v350
      %590 = vmatmul.mubr.bf16.gmra.mxu0 %v349
      %v591 = vpop.f32.mrf.mxu0
      %v592 = vadd.f32 0.0, %v591
      %v593 = vpop.f32.mrf.mxu0
      %v594 = vpop.f32.mrf.mxu0
      %v595 = vadd.f32 0.0, %v594
      %v596 = vpop.f32.mrf.mxu0
      %597 = vmatprep.mubr.bf16.mxu0 %v352
      %598 = vmatmul.mubr.bf16.gmra.mxu0 %v351
      %v599 = vpop.f32.mrf.mxu0
      %v600 = vadd.f32 0.0, %v599
      %v601 = vpop.f32.mrf.mxu0
      %v602 = vpop.f32.mrf.mxu0
      %v603 = vadd.f32 0.0, %v602
      %v604 = vpop.f32.mrf.mxu0
      %605 = vmatprep.mubr.bf16.mxu0 %v354
      %606 = vmatmul.mubr.bf16.gmra.mxu0 %v353
      %v607 = vpop.f32.mrf.mxu0
      %v608 = vadd.f32 0.0, %v607
      %v609 = vpop.f32.mrf.mxu0
      %v610 = vpop.f32.mrf.mxu0
      %v611 = vadd.f32 0.0, %v610
      %v612 = vpop.f32.mrf.mxu0
      %613 = vmatprep.mubr.bf16.mxu0 %v356
      %614 = vmatmul.mubr.bf16.gmra.mxu0 %v355
      %v615 = vpop.f32.mrf.mxu0
      %v616 = vadd.f32 0.0, %v615
      %v617 = vpop.f32.mrf.mxu0
      %v618 = vpop.f32.mrf.mxu0
      %v619 = vadd.f32 0.0, %v618
      %v620 = vpop.f32.mrf.mxu0
      %621 = vmatprep.mubr.bf16.mxu0 %v358
      %622 = vmatmul.mubr.bf16.gmra.mxu0 %v357
      %v623 = vpop.f32.mrf.mxu0
      %v624 = vadd.f32 0.0, %v623
      %v625 = vpop.f32.mrf.mxu0
      %v626 = vpop.f32.mrf.mxu0
      %v627 = vadd.f32 0.0, %v626
      %v628 = vpop.f32.mrf.mxu0
      %629 = vmatprep.mubr.bf16.mxu0 %v360
      %630 = vmatmul.mubr.bf16.gmra.mxu0 %v359
      %v631 = vpop.f32.mrf.mxu0
      %v632 = vadd.f32 0.0, %v631
      %v633 = vpop.f32.mrf.mxu0
      %v634 = vpop.f32.mrf.mxu0
      %v635 = vadd.f32 0.0, %v634
      %v636 = vpop.f32.mrf.mxu0
      %637 = vmatprep.mubr.bf16.mxu0 %v362
      %638 = vmatmul.mubr.bf16.gmra.mxu0 %v361
      %v639 = vpop.f32.mrf.mxu0
      %v640 = vadd.f32 0.0, %v639
      %v641 = vpop.f32.mrf.mxu0
      %v642 = vpop.f32.mrf.mxu0
      %v643 = vadd.f32 0.0, %v642
      %v644 = vpop.f32.mrf.mxu0
      %645 = vmatprep.mubr.bf16.mxu0 %v364
      %646 = vmatmul.mubr.bf16.gmra.mxu0 %v363
      %v647 = vpop.f32.mrf.mxu0
      %v648 = vadd.f32 0.0, %v647
      %v649 = vpop.f32.mrf.mxu0
      %v650 = vpop.f32.mrf.mxu0
      %v651 = vadd.f32 0.0, %v650
      %v652 = vpop.f32.mrf.mxu0
      %653 = vdwg.mxu0
      %v654 = vadd.f32 %v141, %v528
      %v655 = vadd.f32 %v142, %v531
      %v656 = vadd.f32 %v143, %v536
      %v657 = vadd.f32 %v144, %v539
      %v658 = vadd.f32 %v145, %v544
      %v659 = vadd.f32 %v146, %v547
      %v660 = vadd.f32 %v147, %v552
      %v661 = vadd.f32 %v148, %v555
      %v662 = vadd.f32 %v149, %v560
      %v663 = vadd.f32 %v150, %v563
      %v664 = vadd.f32 %v151, %v568
      %v665 = vadd.f32 %v152, %v571
      %v666 = vadd.f32 %v153, %v576
      %v667 = vadd.f32 %v154, %v579
      %v668 = vadd.f32 %v155, %v584
      %v669 = vadd.f32 %v156, %v587
      %v670 = vadd.f32 %v157, %v592
      %v671 = vadd.f32 %v158, %v595
      %v672 = vadd.f32 %v159, %v600
      %v673 = vadd.f32 %v160, %v603
      %v674 = vadd.f32 %v161, %v608
      %v675 = vadd.f32 %v162, %v611
      %v676 = vadd.f32 %v163, %v616
      %v677 = vadd.f32 %v164, %v619
      %v678 = vadd.f32 %v165, %v624
      %v679 = vadd.f32 %v166, %v627
      %v680 = vadd.f32 %v167, %v632
      %v681 = vadd.f32 %v168, %v635
      %v682 = vadd.f32 %v169, %v640
      %v683 = vadd.f32 %v170, %v643
      %v684 = vadd.f32 %v171, %v648
      %v685 = vadd.f32 %v172, %v651
      %686 = vst [vmem:[#allocation2] sm:$0xff] %v654
      %687 = vst [vmem:[#allocation2 + $0x8] sm:$0xff] %v655
      %688 = vst [vmem:[#allocation2 + $0x10] sm:$0xff] %v656
      %689 = vst [vmem:[#allocation2 + $0x18] sm:$0xff] %v657
      %690 = vst [vmem:[#allocation2 + $0x20] sm:$0xff] %v658
      %691 = vst [vmem:[#allocation2 + $0x28] sm:$0xff] %v659
      %692 = vst [vmem:[#allocation2 + $0x30] sm:$0xff] %v660
      %693 = vst [vmem:[#allocation2 + $0x38] sm:$0xff] %v661
      %694 = vst [vmem:[#allocation2 + $0x40] sm:$0xff] %v662
      %695 = vst [vmem:[#allocation2 + $0x48] sm:$0xff] %v663
      %696 = vst [vmem:[#allocation2 + $0x50] sm:$0xff] %v664
      %697 = vst [vmem:[#allocation2 + $0x58] sm:$0xff] %v665
      %698 = vst [vmem:[#allocation2 + $0x60] sm:$0xff] %v666
      %699 = vst [vmem:[#allocation2 + $0x68] sm:$0xff] %v667
      %700 = vst [vmem:[#allocation2 + $0x70] sm:$0xff] %v668
      %701 = vst [vmem:[#allocation2 + $0x78] sm:$0xff] %v669
      %702 = vst [vmem:[#allocation2 + $0x80] sm:$0xff] %v670
      %703 = vst [vmem:[#allocation2 + $0x88] sm:$0xff] %v671
      %704 = vst [vmem:[#allocation2 + $0x90] sm:$0xff] %v672
      %705 = vst [vmem:[#allocation2 + $0x98] sm:$0xff] %v673
      %706 = vst [vmem:[#allocation2 + $0xa0] sm:$0xff] %v674
      %707 = vst [vmem:[#allocation2 + $0xa8] sm:$0xff] %v675
      %708 = vst [vmem:[#allocation2 + $0xb0] sm:$0xff] %v676
      %709 = vst [vmem:[#allocation2 + $0xb8] sm:$0xff] %v677
      %710 = vst [vmem:[#allocation2 + $0xc0] sm:$0xff] %v678
      %711 = vst [vmem:[#allocation2 + $0xc8] sm:$0xff] %v679
      %712 = vst [vmem:[#allocation2 + $0xd0] sm:$0xff] %v680
      %713 = vst [vmem:[#allocation2 + $0xd8] sm:$0xff] %v681
      %714 = vst [vmem:[#allocation2 + $0xe0] sm:$0xff] %v682
      %715 = vst [vmem:[#allocation2 + $0xe8] sm:$0xff] %v683
      %716 = vst [vmem:[#allocation2 + $0xf0] sm:$0xff] %v684
      %717 = vst [vmem:[#allocation2 + $0xf8] sm:$0xff] %v685
    $region49: #{tpu_custom_call.1} parent=1 // pred_fallthru
      _
    // Predicated region
    $region50: #{tpu_custom_call.1} parent=1 // pred_check
      %p718 = pneg %p100
    $region51: #{tpu_custom_call.1} parent=1 // pred_check_branch
      %720 = sbr.rel (%p718) target = $region53
    $region52: #{tpu_custom_call.1} parent=1 // pred_region
      %v721 = vld [vmem:[#allocation2] sm:$0xff]
      %v722 = vld [vmem:[#allocation2 + $0x8] sm:$0xff]
      %v723 = vld [vmem:[#allocation2 + $0x10] sm:$0xff]
      %v724 = vld [vmem:[#allocation2 + $0x18] sm:$0xff]
      %v725 = vld [vmem:[#allocation2 + $0x20] sm:$0xff]
      %v726 = vld [vmem:[#allocation2 + $0x28] sm:$0xff]
      %v727 = vld [vmem:[#allocation2 + $0x30] sm:$0xff]
      %v728 = vld [vmem:[#allocation2 + $0x38] sm:$0xff]
      %v729 = vld [vmem:[#allocation2 + $0x40] sm:$0xff]
      %v730 = vld [vmem:[#allocation2 + $0x48] sm:$0xff]
      %v731 = vld [vmem:[#allocation2 + $0x50] sm:$0xff]
      %v732 = vld [vmem:[#allocation2 + $0x58] sm:$0xff]
      %v733 = vld [vmem:[#allocation2 + $0x60] sm:$0xff]
      %v734 = vld [vmem:[#allocation2 + $0x68] sm:$0xff]
      %v735 = vld [vmem:[#allocation2 + $0x70] sm:$0xff]
      %v736 = vld [vmem:[#allocation2 + $0x78] sm:$0xff]
      %v737 = vld [vmem:[#allocation2 + $0x80] sm:$0xff]
      %v738 = vld [vmem:[#allocation2 + $0x88] sm:$0xff]
      %v739 = vld [vmem:[#allocation2 + $0x90] sm:$0xff]
      %v740 = vld [vmem:[#allocation2 + $0x98] sm:$0xff]
      %v741 = vld [vmem:[#allocation2 + $0xa0] sm:$0xff]
      %v742 = vld [vmem:[#allocation2 + $0xa8] sm:$0xff]
      %v743 = vld [vmem:[#allocation2 + $0xb0] sm:$0xff]
      %v744 = vld [vmem:[#allocation2 + $0xb8] sm:$0xff]
      %v745 = vld [vmem:[#allocation2 + $0xc0] sm:$0xff]
      %v746 = vld [vmem:[#allocation2 + $0xc8] sm:$0xff]
      %v747 = vld [vmem:[#allocation2 + $0xd0] sm:$0xff]
      %v748 = vld [vmem:[#allocation2 + $0xd8] sm:$0xff]
      %v749 = vld [vmem:[#allocation2 + $0xe0] sm:$0xff]
      %v750 = vld [vmem:[#allocation2 + $0xe8] sm:$0xff]
      %v751 = vld [vmem:[#allocation2 + $0xf0] sm:$0xff]
      %v752 = vld [vmem:[#allocation2 + $0xf8] sm:$0xff]
      %v753 = vpack.c.bf16 %v722, %v721
      %v754 = vpack.c.bf16 %v724, %v723
      %v755 = vpack.c.bf16 %v726, %v725
      %v756 = vpack.c.bf16 %v728, %v727
      %v757 = vpack.c.bf16 %v730, %v729
      %v758 = vpack.c.bf16 %v732, %v731
      %v759 = vpack.c.bf16 %v734, %v733
      %v760 = vpack.c.bf16 %v736, %v735
      %v761 = vpack.c.bf16 %v738, %v737
      %v762 = vpack.c.bf16 %v740, %v739
      %v763 = vpack.c.bf16 %v742, %v741
      %v764 = vpack.c.bf16 %v744, %v743
      %v765 = vpack.c.bf16 %v746, %v745
      %v766 = vpack.c.bf16 %v748, %v747
      %v767 = vpack.c.bf16 %v750, %v749
      %v768 = vpack.c.bf16 %v752, %v751
      %v769 = vld [vmem:[#allocation11] sm:$0xf]
      %v770 = vld [vmem:[#allocation11 + $0x4] sm:$0xf]
      %v771 = vld [vmem:[#allocation11 + $0x8] sm:$0xf]
      %v772 = vld [vmem:[#allocation11 + $0xc] sm:$0xf]
      %v773 = vld [vmem:[#allocation11 + $0x10] sm:$0xf]
      %v774 = vld [vmem:[#allocation11 + $0x14] sm:$0xf]
      %v775 = vld [vmem:[#allocation11 + $0x18] sm:$0xf]
      %v776 = vld [vmem:[#allocation11 + $0x1c] sm:$0xf]
      %v777 = vld [vmem:[#allocation11 + $0x20] sm:$0xf]
      %v778 = vld [vmem:[#allocation11 + $0x24] sm:$0xf]
      %v779 = vld [vmem:[#allocation11 + $0x28] sm:$0xf]
      %v780 = vld [vmem:[#allocation11 + $0x2c] sm:$0xf]
      %v781 = vld [vmem:[#allocation11 + $0x30] sm:$0xf]
      %v782 = vld [vmem:[#allocation11 + $0x34] sm:$0xf]
      %v783 = vld [vmem:[#allocation11 + $0x38] sm:$0xf]
      %v784 = vld [vmem:[#allocation11 + $0x3c] sm:$0xf]
      %v785 = vld [vmem:[%s5] sm:$0x1]
      %v787 = vlaneseq
      %v788 = vshrl.u32 %v787, 7
      %v789 = vsub.s32 0, %v788
      %v790 = vrot.slane %v785, %v789
      %v808 = vunpack.c.l.b16 %v769
      %v809 = vunpack.c.l.b16 %v770
      %v810 = vunpack.c.l.b16 %v771
      %v811 = vunpack.c.l.b16 %v772
      %v812 = vunpack.c.l.b16 %v773
      %v813 = vunpack.c.l.b16 %v774
      %v814 = vunpack.c.l.b16 %v775
      %v815 = vunpack.c.l.b16 %v776
      %v816 = vunpack.c.l.b16 %v777
      %v817 = vunpack.c.l.b16 %v778
      %v818 = vunpack.c.l.b16 %v779
      %v819 = vunpack.c.l.b16 %v780
      %v820 = vunpack.c.l.b16 %v781
      %v821 = vunpack.c.l.b16 %v782
      %v822 = vunpack.c.l.b16 %v783
      %v823 = vunpack.c.l.b16 %v784
      %v824 = vpack.c.b16 %v809, %v808
      %v825 = vpack.c.b16 %v811, %v810
      %v826 = vpack.c.b16 %v813, %v812
      %v827 = vpack.c.b16 %v815, %v814
      %v828 = vpack.c.b16 %v817, %v816
      %v829 = vpack.c.b16 %v819, %v818
      %v830 = vpack.c.b16 %v821, %v820
      %v831 = vpack.c.b16 %v823, %v822
      %840 = vmatprep.subr.bf16.mxu0 0
      %841 = vmatpush1.bf16.msra.mxu0 %v831
      %842 = vmatprep.subr.bf16.mxu0 0
      %843 = vmatpush1.bf16.msra.mxu0 %v830
      %844 = vmatprep.subr.bf16.mxu0 0
      %845 = vmatpush1.bf16.msra.mxu0 %v829
      %846 = vmatprep.subr.bf16.mxu0 0
      %847 = vmatpush1.bf16.msra.mxu0 %v828
      %848 = vmatprep.subr.bf16.mxu0 0
      %849 = vmatpush1.bf16.msra.mxu0 %v827
      %850 = vmatprep.subr.bf16.mxu0 0
      %851 = vmatpush1.bf16.msra.mxu0 %v826
      %852 = vmatprep.subr.bf16.mxu0 0
      %853 = vmatpush1.bf16.msra.mxu0 %v825
      %854 = vmatprep.subr.bf16.mxu0 0
      %855 = vmatpush1.bf16.msra.mxu0 %v824
      %856 = vmatprep.subr.bf16.mxu0 0
      %857 = vmatpush2.bf16.msra.mxu0 0
      %858 = vmatprep.subr.bf16.mxu0 0
      %859 = vmatpush2.bf16.msra.mxu0 0
      %860 = vmatprep.subr.bf16.mxu0 0
      %861 = vmatpush2.bf16.msra.mxu0 0
      %862 = vmatprep.subr.bf16.mxu0 0
      %863 = vmatpush2.bf16.msra.mxu0 0
      %864 = vmatprep.subr.bf16.mxu0 0
      %865 = vmatpush2.bf16.msra.mxu0 0
      %866 = vmatprep.subr.bf16.mxu0 0
      %867 = vmatpush2.bf16.msra.mxu0 0
      %868 = vmatprep.subr.bf16.mxu0 0
      %869 = vmatpush2.bf16.msra.mxu0 0
      %870 = vmatprep.subr.bf16.mxu0 0
      %871 = vmatpush2.bf16.msra.mxu0 0
      %872 = vmatprep.mubr.bf16.mxu0 0
      %873 = vmatmul.mubr.bf16.gmra.mxu0 %v753
      %v874 = vpop.f32.mrf.mxu0
      %v875 = vadd.f32 %v790, %v874
      %v876 = vpop.f32.mrf.mxu0
      %v877 = vpop.f32.mrf.mxu0
      %v878 = vadd.f32 %v790, %v877
      %v879 = vpop.f32.mrf.mxu0
      %880 = vmatprep.mubr.bf16.mxu0 0
      %881 = vmatmul.mubr.bf16.gmra.mxu0 %v754
      %v882 = vpop.f32.mrf.mxu0
      %v883 = vadd.f32 %v790, %v882
      %v884 = vpop.f32.mrf.mxu0
      %v885 = vpop.f32.mrf.mxu0
      %v886 = vadd.f32 %v790, %v885
      %v887 = vpop.f32.mrf.mxu0
      %888 = vmatprep.mubr.bf16.mxu0 0
      %889 = vmatmul.mubr.bf16.gmra.mxu0 %v755
      %v890 = vpop.f32.mrf.mxu0
      %v891 = vadd.f32 %v790, %v890
      %v892 = vpop.f32.mrf.mxu0
      %v893 = vpop.f32.mrf.mxu0
      %v894 = vadd.f32 %v790, %v893
      %v895 = vpop.f32.mrf.mxu0
      %896 = vmatprep.mubr.bf16.mxu0 0
      %897 = vmatmul.mubr.bf16.gmra.mxu0 %v756
      %v898 = vpop.f32.mrf.mxu0
      %v899 = vadd.f32 %v790, %v898
      %v900 = vpop.f32.mrf.mxu0
      %v901 = vpop.f32.mrf.mxu0
      %v902 = vadd.f32 %v790, %v901
      %v903 = vpop.f32.mrf.mxu0
      %904 = vmatprep.mubr.bf16.mxu0 0
      %905 = vmatmul.mubr.bf16.gmra.mxu0 %v757
      %v906 = vpop.f32.mrf.mxu0
      %v907 = vadd.f32 %v790, %v906
      %v908 = vpop.f32.mrf.mxu0
      %v909 = vpop.f32.mrf.mxu0
      %v910 = vadd.f32 %v790, %v909
      %v911 = vpop.f32.mrf.mxu0
      %912 = vmatprep.mubr.bf16.mxu0 0
      %913 = vmatmul.mubr.bf16.gmra.mxu0 %v758
      %v914 = vpop.f32.mrf.mxu0
      %v915 = vadd.f32 %v790, %v914
      %v916 = vpop.f32.mrf.mxu0
      %v917 = vpop.f32.mrf.mxu0
      %v918 = vadd.f32 %v790, %v917
      %v919 = vpop.f32.mrf.mxu0
      %920 = vmatprep.mubr.bf16.mxu0 0
      %921 = vmatmul.mubr.bf16.gmra.mxu0 %v759
      %v922 = vpop.f32.mrf.mxu0
      %v923 = vadd.f32 %v790, %v922
      %v924 = vpop.f32.mrf.mxu0
      %v925 = vpop.f32.mrf.mxu0
      %v926 = vadd.f32 %v790, %v925
      %v927 = vpop.f32.mrf.mxu0
      %928 = vmatprep.mubr.bf16.mxu0 0
      %929 = vmatmul.mubr.bf16.gmra.mxu0 %v760
      %v930 = vpop.f32.mrf.mxu0
      %v931 = vadd.f32 %v790, %v930
      %v932 = vpop.f32.mrf.mxu0
      %v933 = vpop.f32.mrf.mxu0
      %v934 = vadd.f32 %v790, %v933
      %v935 = vpop.f32.mrf.mxu0
      %936 = vmatprep.mubr.bf16.mxu0 0
      %937 = vmatmul.mubr.bf16.gmra.mxu0 %v761
      %v938 = vpop.f32.mrf.mxu0
      %v939 = vadd.f32 %v790, %v938
      %v940 = vpop.f32.mrf.mxu0
      %v941 = vpop.f32.mrf.mxu0
      %v942 = vadd.f32 %v790, %v941
      %v943 = vpop.f32.mrf.mxu0
      %944 = vmatprep.mubr.bf16.mxu0 0
      %945 = vmatmul.mubr.bf16.gmra.mxu0 %v762
      %v946 = vpop.f32.mrf.mxu0
      %v947 = vadd.f32 %v790, %v946
      %v948 = vpop.f32.mrf.mxu0
      %v949 = vpop.f32.mrf.mxu0
      %v950 = vadd.f32 %v790, %v949
      %v951 = vpop.f32.mrf.mxu0
      %952 = vmatprep.mubr.bf16.mxu0 0
      %953 = vmatmul.mubr.bf16.gmra.mxu0 %v763
      %v954 = vpop.f32.mrf.mxu0
      %v955 = vadd.f32 %v790, %v954
      %v956 = vpop.f32.mrf.mxu0
      %v957 = vpop.f32.mrf.mxu0
      %v958 = vadd.f32 %v790, %v957
      %v959 = vpop.f32.mrf.mxu0
      %960 = vmatprep.mubr.bf16.mxu0 0
      %961 = vmatmul.mubr.bf16.gmra.mxu0 %v764
      %v962 = vpop.f32.mrf.mxu0
      %v963 = vadd.f32 %v790, %v962
      %v964 = vpop.f32.mrf.mxu0
      %v965 = vpop.f32.mrf.mxu0
      %v966 = vadd.f32 %v790, %v965
      %v967 = vpop.f32.mrf.mxu0
      %968 = vmatprep.mubr.bf16.mxu0 0
      %969 = vmatmul.mubr.bf16.gmra.mxu0 %v765
      %v970 = vpop.f32.mrf.mxu0
      %v971 = vadd.f32 %v790, %v970
      %v972 = vpop.f32.mrf.mxu0
      %v973 = vpop.f32.mrf.mxu0
      %v974 = vadd.f32 %v790, %v973
      %v975 = vpop.f32.mrf.mxu0
      %976 = vmatprep.mubr.bf16.mxu0 0
      %977 = vmatmul.mubr.bf16.gmra.mxu0 %v766
      %v978 = vpop.f32.mrf.mxu0
      %v979 = vadd.f32 %v790, %v978
      %v980 = vpop.f32.mrf.mxu0
      %v981 = vpop.f32.mrf.mxu0
      %v982 = vadd.f32 %v790, %v981
      %v983 = vpop.f32.mrf.mxu0
      %984 = vmatprep.mubr.bf16.mxu0 0
      %985 = vmatmul.mubr.bf16.gmra.mxu0 %v767
      %v986 = vpop.f32.mrf.mxu0
      %v987 = vadd.f32 %v790, %v986
      %v988 = vpop.f32.mrf.mxu0
      %v989 = vpop.f32.mrf.mxu0
      %v990 = vadd.f32 %v790, %v989
      %v991 = vpop.f32.mrf.mxu0
      %992 = vmatprep.mubr.bf16.mxu0 0
      %993 = vmatmul.mubr.bf16.gmra.mxu0 %v768
      %v994 = vpop.f32.mrf.mxu0
      %v995 = vadd.f32 %v790, %v994
      %v996 = vpop.f32.mrf.mxu0
      %v997 = vpop.f32.mrf.mxu0
      %v998 = vadd.f32 %v790, %v997
      %v999 = vpop.f32.mrf.mxu0
      %1000 = vdwg.mxu0
      %v1001 = vmax.f32 %v875, 0.0
      %v1002 = vmax.f32 %v878, 0.0
      %v1003 = vmax.f32 %v883, 0.0
      %v1004 = vmax.f32 %v886, 0.0
      %v1005 = vmax.f32 %v891, 0.0
      %v1006 = vmax.f32 %v894, 0.0
      %v1007 = vmax.f32 %v899, 0.0
      %v1008 = vmax.f32 %v902, 0.0
      %v1009 = vmax.f32 %v907, 0.0
      %v1010 = vmax.f32 %v910, 0.0
      %v1011 = vmax.f32 %v915, 0.0
      %v1012 = vmax.f32 %v918, 0.0
      %v1013 = vmax.f32 %v923, 0.0
      %v1014 = vmax.f32 %v926, 0.0
      %v1015 = vmax.f32 %v931, 0.0
      %v1016 = vmax.f32 %v934, 0.0
      %v1017 = vmax.f32 %v939, 0.0
      %v1018 = vmax.f32 %v942, 0.0
      %v1019 = vmax.f32 %v947, 0.0
      %v1020 = vmax.f32 %v950, 0.0
      %v1021 = vmax.f32 %v955, 0.0
      %v1022 = vmax.f32 %v958, 0.0
      %v1023 = vmax.f32 %v963, 0.0
      %v1024 = vmax.f32 %v966, 0.0
      %v1025 = vmax.f32 %v971, 0.0
      %v1026 = vmax.f32 %v974, 0.0
      %v1027 = vmax.f32 %v979, 0.0
      %v1028 = vmax.f32 %v982, 0.0
      %v1029 = vmax.f32 %v987, 0.0
      %v1030 = vmax.f32 %v990, 0.0
      %v1031 = vmax.f32 %v995, 0.0
      %v1032 = vmax.f32 %v998, 0.0
      %v1033 = vpack.c.bf16 %v1002, %v1001
      %v1034 = vpack.c.bf16 %v1004, %v1003
      %v1035 = vpack.c.bf16 %v1006, %v1005
      %v1036 = vpack.c.bf16 %v1008, %v1007
      %v1037 = vpack.c.bf16 %v1010, %v1009
      %v1038 = vpack.c.bf16 %v1012, %v1011
      %v1039 = vpack.c.bf16 %v1014, %v1013
      %v1040 = vpack.c.bf16 %v1016, %v1015
      %v1041 = vpack.c.bf16 %v1018, %v1017
      %v1042 = vpack.c.bf16 %v1020, %v1019
      %v1043 = vpack.c.bf16 %v1022, %v1021
      %v1044 = vpack.c.bf16 %v1024, %v1023
      %v1045 = vpack.c.bf16 %v1026, %v1025
      %v1046 = vpack.c.bf16 %v1028, %v1027
      %v1047 = vpack.c.bf16 %v1030, %v1029
      %v1048 = vpack.c.bf16 %v1032, %v1031
      %v1049 = vld [vmem:[#allocation12] sm:$0xf]
      %v1050 = vld [vmem:[#allocation12 + $0x4] sm:$0xf]
      %v1051 = vld [vmem:[#allocation12 + $0x8] sm:$0xf]
      %v1052 = vld [vmem:[#allocation12 + $0xc] sm:$0xf]
      %v1053 = vld [vmem:[#allocation12 + $0x10] sm:$0xf]
      %v1054 = vld [vmem:[#allocation12 + $0x14] sm:$0xf]
      %v1055 = vld [vmem:[#allocation12 + $0x18] sm:$0xf]
      %v1056 = vld [vmem:[#allocation12 + $0x1c] sm:$0xf]
      %v1057 = vld [vmem:[#allocation12 + $0x20] sm:$0xf]
      %v1058 = vld [vmem:[#allocation12 + $0x24] sm:$0xf]
      %v1059 = vld [vmem:[#allocation12 + $0x28] sm:$0xf]
      %v1060 = vld [vmem:[#allocation12 + $0x2c] sm:$0xf]
      %v1061 = vld [vmem:[#allocation12 + $0x30] sm:$0xf]
      %v1062 = vld [vmem:[#allocation12 + $0x34] sm:$0xf]
      %v1063 = vld [vmem:[#allocation12 + $0x38] sm:$0xf]
      %v1064 = vld [vmem:[#allocation12 + $0x3c] sm:$0xf]
      %v1065 = vld [vmem:[%s7] sm:$0x1]
      %v1067 = vlaneseq
      %v1068 = vshrl.u32 %v1067, 7
      %v1069 = vsub.s32 0, %v1068
      %v1070 = vrot.slane %v1065, %v1069
      %v1088 = vunpack.c.l.b16 %v1049
      %v1089 = vunpack.c.l.b16 %v1050
      %v1090 = vunpack.c.l.b16 %v1051
      %v1091 = vunpack.c.l.b16 %v1052
      %v1092 = vunpack.c.l.b16 %v1053
      %v1093 = vunpack.c.l.b16 %v1054
      %v1094 = vunpack.c.l.b16 %v1055
      %v1095 = vunpack.c.l.b16 %v1056
      %v1096 = vunpack.c.l.b16 %v1057
      %v1097 = vunpack.c.l.b16 %v1058
      %v1098 = vunpack.c.l.b16 %v1059
      %v1099 = vunpack.c.l.b16 %v1060
      %v1100 = vunpack.c.l.b16 %v1061
      %v1101 = vunpack.c.l.b16 %v1062
      %v1102 = vunpack.c.l.b16 %v1063
      %v1103 = vunpack.c.l.b16 %v1064
      %v1104 = vpack.c.b16 %v1089, %v1088
      %v1105 = vpack.c.b16 %v1091, %v1090
      %v1106 = vpack.c.b16 %v1093, %v1092
      %v1107 = vpack.c.b16 %v1095, %v1094
      %v1108 = vpack.c.b16 %v1097, %v1096
      %v1109 = vpack.c.b16 %v1099, %v1098
      %v1110 = vpack.c.b16 %v1101, %v1100
      %v1111 = vpack.c.b16 %v1103, %v1102
      %1120 = vmatprep.subr.bf16.mxu0 0
      %1121 = vmatpush1.bf16.msra.mxu0 %v1111
      %1122 = vmatprep.subr.bf16.mxu0 0
      %1123 = vmatpush1.bf16.msra.mxu0 %v1110
      %1124 = vmatprep.subr.bf16.mxu0 0
      %1125 = vmatpush1.bf16.msra.mxu0 %v1109
      %1126 = vmatprep.subr.bf16.mxu0 0
      %1127 = vmatpush1.bf16.msra.mxu0 %v1108
      %1128 = vmatprep.subr.bf16.mxu0 0
      %1129 = vmatpush1.bf16.msra.mxu0 %v1107
      %1130 = vmatprep.subr.bf16.mxu0 0
      %1131 = vmatpush1.bf16.msra.mxu0 %v1106
      %1132 = vmatprep.subr.bf16.mxu0 0
      %1133 = vmatpush1.bf16.msra.mxu0 %v1105
      %1134 = vmatprep.subr.bf16.mxu0 0
      %1135 = vmatpush1.bf16.msra.mxu0 %v1104
      %1136 = vmatprep.subr.bf16.mxu0 0
      %1137 = vmatpush2.bf16.msra.mxu0 0
      %1138 = vmatprep.subr.bf16.mxu0 0
      %1139 = vmatpush2.bf16.msra.mxu0 0
      %1140 = vmatprep.subr.bf16.mxu0 0
      %1141 = vmatpush2.bf16.msra.mxu0 0
      %1142 = vmatprep.subr.bf16.mxu0 0
      %1143 = vmatpush2.bf16.msra.mxu0 0
      %1144 = vmatprep.subr.bf16.mxu0 0
      %1145 = vmatpush2.bf16.msra.mxu0 0
      %1146 = vmatprep.subr.bf16.mxu0 0
      %1147 = vmatpush2.bf16.msra.mxu0 0
      %1148 = vmatprep.subr.bf16.mxu0 0
      %1149 = vmatpush2.bf16.msra.mxu0 0
      %1150 = vmatprep.subr.bf16.mxu0 0
      %1151 = vmatpush2.bf16.msra.mxu0 0
      %1152 = vmatprep.mubr.bf16.mxu0 0
      %1153 = vmatmul.mubr.bf16.gmra.mxu0 %v1033
      %v1154 = vpop.f32.mrf.mxu0
      %v1155 = vadd.f32 %v1070, %v1154
      %v1156 = vpop.f32.mrf.mxu0
      %v1157 = vpop.f32.mrf.mxu0
      %v1158 = vadd.f32 %v1070, %v1157
      %v1159 = vpop.f32.mrf.mxu0
      %1160 = vmatprep.mubr.bf16.mxu0 0
      %1161 = vmatmul.mubr.bf16.gmra.mxu0 %v1034
      %v1162 = vpop.f32.mrf.mxu0
      %v1163 = vadd.f32 %v1070, %v1162
      %v1164 = vpop.f32.mrf.mxu0
      %v1165 = vpop.f32.mrf.mxu0
      %v1166 = vadd.f32 %v1070, %v1165
      %v1167 = vpop.f32.mrf.mxu0
      %1168 = vmatprep.mubr.bf16.mxu0 0
      %1169 = vmatmul.mubr.bf16.gmra.mxu0 %v1035
      %v1170 = vpop.f32.mrf.mxu0
      %v1171 = vadd.f32 %v1070, %v1170
      %v1172 = vpop.f32.mrf.mxu0
      %v1173 = vpop.f32.mrf.mxu0
      %v1174 = vadd.f32 %v1070, %v1173
      %v1175 = vpop.f32.mrf.mxu0
      %1176 = vmatprep.mubr.bf16.mxu0 0
      %1177 = vmatmul.mubr.bf16.gmra.mxu0 %v1036
      %v1178 = vpop.f32.mrf.mxu0
      %v1179 = vadd.f32 %v1070, %v1178
      %v1180 = vpop.f32.mrf.mxu0
      %v1181 = vpop.f32.mrf.mxu0
      %v1182 = vadd.f32 %v1070, %v1181
      %v1183 = vpop.f32.mrf.mxu0
      %1184 = vmatprep.mubr.bf16.mxu0 0
      %1185 = vmatmul.mubr.bf16.gmra.mxu0 %v1037
      %v1186 = vpop.f32.mrf.mxu0
      %v1187 = vadd.f32 %v1070, %v1186
      %v1188 = vpop.f32.mrf.mxu0
      %v1189 = vpop.f32.mrf.mxu0
      %v1190 = vadd.f32 %v1070, %v1189
      %v1191 = vpop.f32.mrf.mxu0
      %1192 = vmatprep.mubr.bf16.mxu0 0
      %1193 = vmatmul.mubr.bf16.gmra.mxu0 %v1038
      %v1194 = vpop.f32.mrf.mxu0
      %v1195 = vadd.f32 %v1070, %v1194
      %v1196 = vpop.f32.mrf.mxu0
      %v1197 = vpop.f32.mrf.mxu0
      %v1198 = vadd.f32 %v1070, %v1197
      %v1199 = vpop.f32.mrf.mxu0
      %1200 = vmatprep.mubr.bf16.mxu0 0
      %1201 = vmatmul.mubr.bf16.gmra.mxu0 %v1039
      %v1202 = vpop.f32.mrf.mxu0
      %v1203 = vadd.f32 %v1070, %v1202
      %v1204 = vpop.f32.mrf.mxu0
      %v1205 = vpop.f32.mrf.mxu0
      %v1206 = vadd.f32 %v1070, %v1205
      %v1207 = vpop.f32.mrf.mxu0
      %1208 = vmatprep.mubr.bf16.mxu0 0
      %1209 = vmatmul.mubr.bf16.gmra.mxu0 %v1040
      %v1210 = vpop.f32.mrf.mxu0
      %v1211 = vadd.f32 %v1070, %v1210
      %v1212 = vpop.f32.mrf.mxu0
      %v1213 = vpop.f32.mrf.mxu0
      %v1214 = vadd.f32 %v1070, %v1213
      %v1215 = vpop.f32.mrf.mxu0
      %1216 = vmatprep.mubr.bf16.mxu0 0
      %1217 = vmatmul.mubr.bf16.gmra.mxu0 %v1041
      %v1218 = vpop.f32.mrf.mxu0
      %v1219 = vadd.f32 %v1070, %v1218
      %v1220 = vpop.f32.mrf.mxu0
      %v1221 = vpop.f32.mrf.mxu0
      %v1222 = vadd.f32 %v1070, %v1221
      %v1223 = vpop.f32.mrf.mxu0
      %1224 = vmatprep.mubr.bf16.mxu0 0
      %1225 = vmatmul.mubr.bf16.gmra.mxu0 %v1042
      %v1226 = vpop.f32.mrf.mxu0
      %v1227 = vadd.f32 %v1070, %v1226
      %v1228 = vpop.f32.mrf.mxu0
      %v1229 = vpop.f32.mrf.mxu0
      %v1230 = vadd.f32 %v1070, %v1229
      %v1231 = vpop.f32.mrf.mxu0
      %1232 = vmatprep.mubr.bf16.mxu0 0
      %1233 = vmatmul.mubr.bf16.gmra.mxu0 %v1043
      %v1234 = vpop.f32.mrf.mxu0
      %v1235 = vadd.f32 %v1070, %v1234
      %v1236 = vpop.f32.mrf.mxu0
      %v1237 = vpop.f32.mrf.mxu0
      %v1238 = vadd.f32 %v1070, %v1237
      %v1239 = vpop.f32.mrf.mxu0
      %1240 = vmatprep.mubr.bf16.mxu0 0
      %1241 = vmatmul.mubr.bf16.gmra.mxu0 %v1044
      %v1242 = vpop.f32.mrf.mxu0
      %v1243 = vadd.f32 %v1070, %v1242
      %v1244 = vpop.f32.mrf.mxu0
      %v1245 = vpop.f32.mrf.mxu0
      %v1246 = vadd.f32 %v1070, %v1245
      %v1247 = vpop.f32.mrf.mxu0
      %1248 = vmatprep.mubr.bf16.mxu0 0
      %1249 = vmatmul.mubr.bf16.gmra.mxu0 %v1045
      %v1250 = vpop.f32.mrf.mxu0
      %v1251 = vadd.f32 %v1070, %v1250
      %v1252 = vpop.f32.mrf.mxu0
      %v1253 = vpop.f32.mrf.mxu0
      %v1254 = vadd.f32 %v1070, %v1253
      %v1255 = vpop.f32.mrf.mxu0
      %1256 = vmatprep.mubr.bf16.mxu0 0
      %1257 = vmatmul.mubr.bf16.gmra.mxu0 %v1046
      %v1258 = vpop.f32.mrf.mxu0
      %v1259 = vadd.f32 %v1070, %v1258
      %v1260 = vpop.f32.mrf.mxu0
      %v1261 = vpop.f32.mrf.mxu0
      %v1262 = vadd.f32 %v1070, %v1261
      %v1263 = vpop.f32.mrf.mxu0
      %1264 = vmatprep.mubr.bf16.mxu0 0
      %1265 = vmatmul.mubr.bf16.gmra.mxu0 %v1047
      %v1266 = vpop.f32.mrf.mxu0
      %v1267 = vadd.f32 %v1070, %v1266
      %v1268 = vpop.f32.mrf.mxu0
      %v1269 = vpop.f32.mrf.mxu0
      %v1270 = vadd.f32 %v1070, %v1269
      %v1271 = vpop.f32.mrf.mxu0
      %1272 = vmatprep.mubr.bf16.mxu0 0
      %1273 = vmatmul.mubr.bf16.gmra.mxu0 %v1048
      %v1274 = vpop.f32.mrf.mxu0
      %v1275 = vadd.f32 %v1070, %v1274
      %v1276 = vpop.f32.mrf.mxu0
      %v1277 = vpop.f32.mrf.mxu0
      %v1278 = vadd.f32 %v1070, %v1277
      %v1279 = vpop.f32.mrf.mxu0
      %1280 = vdwg.mxu0
      %v1281 = vmax.f32 %v1155, 0.0
      %v1282 = vmax.f32 %v1158, 0.0
      %v1283 = vmax.f32 %v1163, 0.0
      %v1284 = vmax.f32 %v1166, 0.0
      %v1285 = vmax.f32 %v1171, 0.0
      %v1286 = vmax.f32 %v1174, 0.0
      %v1287 = vmax.f32 %v1179, 0.0
      %v1288 = vmax.f32 %v1182, 0.0
      %v1289 = vmax.f32 %v1187, 0.0
      %v1290 = vmax.f32 %v1190, 0.0
      %v1291 = vmax.f32 %v1195, 0.0
      %v1292 = vmax.f32 %v1198, 0.0
      %v1293 = vmax.f32 %v1203, 0.0
      %v1294 = vmax.f32 %v1206, 0.0
      %v1295 = vmax.f32 %v1211, 0.0
      %v1296 = vmax.f32 %v1214, 0.0
      %v1297 = vmax.f32 %v1219, 0.0
      %v1298 = vmax.f32 %v1222, 0.0
      %v1299 = vmax.f32 %v1227, 0.0
      %v1300 = vmax.f32 %v1230, 0.0
      %v1301 = vmax.f32 %v1235, 0.0
      %v1302 = vmax.f32 %v1238, 0.0
      %v1303 = vmax.f32 %v1243, 0.0
      %v1304 = vmax.f32 %v1246, 0.0
      %v1305 = vmax.f32 %v1251, 0.0
      %v1306 = vmax.f32 %v1254, 0.0
      %v1307 = vmax.f32 %v1259, 0.0
      %v1308 = vmax.f32 %v1262, 0.0
      %v1309 = vmax.f32 %v1267, 0.0
      %v1310 = vmax.f32 %v1270, 0.0
      %v1311 = vmax.f32 %v1275, 0.0
      %v1312 = vmax.f32 %v1278, 0.0
      %v1313 = vpack.c.bf16 %v1282, %v1281
      %v1314 = vpack.c.bf16 %v1284, %v1283
      %v1315 = vpack.c.bf16 %v1286, %v1285
      %v1316 = vpack.c.bf16 %v1288, %v1287
      %v1317 = vpack.c.bf16 %v1290, %v1289
      %v1318 = vpack.c.bf16 %v1292, %v1291
      %v1319 = vpack.c.bf16 %v1294, %v1293
      %v1320 = vpack.c.bf16 %v1296, %v1295
      %v1321 = vpack.c.bf16 %v1298, %v1297
      %v1322 = vpack.c.bf16 %v1300, %v1299
      %v1323 = vpack.c.bf16 %v1302, %v1301
      %v1324 = vpack.c.bf16 %v1304, %v1303
      %v1325 = vpack.c.bf16 %v1306, %v1305
      %v1326 = vpack.c.bf16 %v1308, %v1307
      %v1327 = vpack.c.bf16 %v1310, %v1309
      %v1328 = vpack.c.bf16 %v1312, %v1311
      %v1345 = vunpack.c.l.b16 %v1313
      %v1346 = vunpack.c.h.b16 %v1313
      %v1347 = vunpack.c.l.b16 %v1314
      %v1348 = vunpack.c.h.b16 %v1314
      %v1349 = vunpack.c.l.b16 %v1315
      %v1350 = vunpack.c.h.b16 %v1315
      %v1351 = vunpack.c.l.b16 %v1316
      %v1352 = vunpack.c.h.b16 %v1316
      %v1353 = vunpack.c.l.b16 %v1317
      %v1354 = vunpack.c.h.b16 %v1317
      %v1355 = vunpack.c.l.b16 %v1318
      %v1356 = vunpack.c.h.b16 %v1318
      %v1357 = vunpack.c.l.b16 %v1319
      %v1358 = vunpack.c.h.b16 %v1319
      %v1359 = vunpack.c.l.b16 %v1320
      %v1360 = vunpack.c.h.b16 %v1320
      %v1361 = vunpack.c.l.b16 %v1321
      %v1362 = vunpack.c.h.b16 %v1321
      %v1363 = vunpack.c.l.b16 %v1322
      %v1364 = vunpack.c.h.b16 %v1322
      %v1365 = vunpack.c.l.b16 %v1323
      %v1366 = vunpack.c.h.b16 %v1323
      %v1367 = vunpack.c.l.b16 %v1324
      %v1368 = vunpack.c.h.b16 %v1324
      %v1369 = vunpack.c.l.b16 %v1325
      %v1370 = vunpack.c.h.b16 %v1325
      %v1371 = vunpack.c.l.b16 %v1326
      %v1372 = vunpack.c.h.b16 %v1326
      %v1373 = vunpack.c.l.b16 %v1327
      %v1374 = vunpack.c.h.b16 %v1327
      %v1375 = vunpack.c.l.b16 %v1328
      %v1376 = vunpack.c.h.b16 %v1328
      %v1377 = vpack.c.b16 %v1345, %v1345
      %v1378 = vpack.c.b16 %v1346, %v1346
      %v1379 = vpack.c.b16 %v1347, %v1347
      %v1380 = vpack.c.b16 %v1348, %v1348
      %v1381 = vpack.c.b16 %v1349, %v1349
      %v1382 = vpack.c.b16 %v1350, %v1350
      %v1383 = vpack.c.b16 %v1351, %v1351
      %v1384 = vpack.c.b16 %v1352, %v1352
      %v1385 = vpack.c.b16 %v1353, %v1353
      %v1386 = vpack.c.b16 %v1354, %v1354
      %v1387 = vpack.c.b16 %v1355, %v1355
      %v1388 = vpack.c.b16 %v1356, %v1356
      %v1389 = vpack.c.b16 %v1357, %v1357
      %v1390 = vpack.c.b16 %v1358, %v1358
      %v1391 = vpack.c.b16 %v1359, %v1359
      %v1392 = vpack.c.b16 %v1360, %v1360
      %v1393 = vpack.c.b16 %v1361, %v1361
      %v1394 = vpack.c.b16 %v1362, %v1362
      %v1395 = vpack.c.b16 %v1363, %v1363
      %v1396 = vpack.c.b16 %v1364, %v1364
      %v1397 = vpack.c.b16 %v1365, %v1365
      %v1398 = vpack.c.b16 %v1366, %v1366
      %v1399 = vpack.c.b16 %v1367, %v1367
      %v1400 = vpack.c.b16 %v1368, %v1368
      %v1401 = vpack.c.b16 %v1369, %v1369
      %v1402 = vpack.c.b16 %v1370, %v1370
      %v1403 = vpack.c.b16 %v1371, %v1371
      %v1404 = vpack.c.b16 %v1372, %v1372
      %v1405 = vpack.c.b16 %v1373, %v1373
      %v1406 = vpack.c.b16 %v1374, %v1374
      %v1407 = vpack.c.b16 %v1375, %v1375
      %v1408 = vpack.c.b16 %v1376, %v1376
      %1441 = vst [vmem:[#allocation14] sm:$0xf] %v1377
      %1442 = vst [vmem:[#allocation14 + $0x4] sm:$0xf] %v1378
      %1443 = vst [vmem:[#allocation14 + $0x8] sm:$0xf] %v1379
      %1444 = vst [vmem:[#allocation14 + $0xc] sm:$0xf] %v1380
      %1445 = vst [vmem:[#allocation14 + $0x10] sm:$0xf] %v1381
      %1446 = vst [vmem:[#allocation14 + $0x14] sm:$0xf] %v1382
      %1447 = vst [vmem:[#allocation14 + $0x18] sm:$0xf] %v1383
      %1448 = vst [vmem:[#allocation14 + $0x1c] sm:$0xf] %v1384
      %1449 = vst [vmem:[#allocation14 + $0x20] sm:$0xf] %v1385
      %1450 = vst [vmem:[#allocation14 + $0x24] sm:$0xf] %v1386
      %1451 = vst [vmem:[#allocation14 + $0x28] sm:$0xf] %v1387
      %1452 = vst [vmem:[#allocation14 + $0x2c] sm:$0xf] %v1388
      %1453 = vst [vmem:[#allocation14 + $0x30] sm:$0xf] %v1389
      %1454 = vst [vmem:[#allocation14 + $0x34] sm:$0xf] %v1390
      %1455 = vst [vmem:[#allocation14 + $0x38] sm:$0xf] %v1391
      %1456 = vst [vmem:[#allocation14 + $0x3c] sm:$0xf] %v1392
      %1457 = vst [vmem:[#allocation14 + $0x40] sm:$0xf] %v1393
      %1458 = vst [vmem:[#allocation14 + $0x44] sm:$0xf] %v1394
      %1459 = vst [vmem:[#allocation14 + $0x48] sm:$0xf] %v1395
      %1460 = vst [vmem:[#allocation14 + $0x4c] sm:$0xf] %v1396
      %1461 = vst [vmem:[#allocation14 + $0x50] sm:$0xf] %v1397
      %1462 = vst [vmem:[#allocation14 + $0x54] sm:$0xf] %v1398
      %1463 = vst [vmem:[#allocation14 + $0x58] sm:$0xf] %v1399
      %1464 = vst [vmem:[#allocation14 + $0x5c] sm:$0xf] %v1400
      %1465 = vst [vmem:[#allocation14 + $0x60] sm:$0xf] %v1401
      %1466 = vst [vmem:[#allocation14 + $0x64] sm:$0xf] %v1402
      %1467 = vst [vmem:[#allocation14 + $0x68] sm:$0xf] %v1403
      %1468 = vst [vmem:[#allocation14 + $0x6c] sm:$0xf] %v1404
      %1469 = vst [vmem:[#allocation14 + $0x70] sm:$0xf] %v1405
      %1470 = vst [vmem:[#allocation14 + $0x74] sm:$0xf] %v1406
      %1471 = vst [vmem:[#allocation14 + $0x78] sm:$0xf] %v1407
      %1472 = vst [vmem:[#allocation14 + $0x7c] sm:$0xf] %v1408
    $region53: #{tpu_custom_call.1} parent=1 // pred_fallthru
      _
    // Predicated region
    $region54: #{tpu_custom_call.1} parent=1 // pred_check
      _
    $region55: #{tpu_custom_call.1} parent=1 // pred_check_branch
      %1474 = sbr.rel (0) target = $region57
    $region56: #{tpu_custom_call.1} parent=1 // pred_region
      %s1476 = ssub.s32 2048, 2048
      %1477 = vsyncadd [#allocation8], %s1476
      %s1478 = sshll.u32 [#allocation14], 4
      %s1479 = int_to_ptr.vmem [resolvable:$true] %s1478
      %1484 = dma.vmem_to_hbm [thread:$0]  %s1479, 2048, %s8, [#allocation8], 64, 64, 4
    $region57: #{tpu_custom_call.1} parent=1 // pred_fallthru
      _
    // Predicated region
    $region58: #{tpu_custom_call.1} parent=1 // pred_check
      _
    $region59: #{tpu_custom_call.1} parent=1 // pred_check_branch
      %1486 = sbr.rel (0) target = $region61
    $region60: #{tpu_custom_call.1} parent=1 // pred_region
      %1487 = dma.done [#allocation8], 2048
    $region61: #{tpu_custom_call.1} parent=1 // pred_fallthru
      _
    %1488 = vsyncpa [#allocation7], 1
    %1489 = vsyncpa [#allocation10], 1
    %1490 = vsyncpa [#allocation13], 1
    %1491 = vsyncpa [#allocation8], 1

</llo_original>
